<compile_context>
chip_gen: v5e
topology: v5e:2x2
jax: 0.10.0
libtpu: 0.0.40
codegen_flags: <defaults>
</compile_context>

<pallas_src>
import functools

import jax
import jax.numpy as jnp
from jax.experimental import pallas as pl
from jax.experimental.pallas import tpu as pltpu


# ----------------------------------------------------------------------------
# Fused kernel: block-diag embedding lookup + split first matmul + MLP stack
# ----------------------------------------------------------------------------
def _make_fused_kernel(n_layers, n_cat):
    def kernel(idx_ref, xnum_ref, bdiag_ref, w_e_ref, w_n_ref, *rest):
        # rest = (b0, scale0, shift0,  w1, b1, scale1, shift1, ...,  out_ref)
        out_ref = rest[-1]
        params = rest[:-1]

        # --- embedding lookup: one combined one-hot, one MXU matmul --------
        idx = idx_ref[...]                               # (TB, n_cat), pre-offset
        tb = idx.shape[0]
        total_ni = bdiag_ref.shape[0]
        iota = jax.lax.broadcasted_iota(jnp.int32, (tb, total_ni), 1)
        onehot = jnp.zeros((tb, total_ni), jnp.float32)
        for c in range(n_cat):                           # n_cat is tiny & static
            onehot = onehot + (idx[:, c:c + 1] == iota).astype(jnp.float32)
        emb = jnp.dot(onehot, bdiag_ref[...],
                      preferred_element_type=jnp.float32)  # (TB, emb_dim), lane-dense

        # --- layer 0: split matmul avoids materializing concat([emb, num]) -
        b0, s0, t0 = params[0], params[1], params[2]
        y = (jnp.dot(emb, w_e_ref[...], preferred_element_type=jnp.float32)
             + jnp.dot(xnum_ref[...], w_n_ref[...],
                       preferred_element_type=jnp.float32)
             + b0[...])
        y = jnp.maximum(y, 0.0) * s0[...] + t0[...]       # ReLU -> folded BN

        # --- remaining layers ----------------------------------------------
        p = 3
        for _ in range(1, n_layers):
            w, b, s, t = params[p], params[p + 1], params[p + 2], params[p + 3]
            p += 4
            y = jnp.dot(y, w[...], preferred_element_type=jnp.float32) + b[...]
            y = jnp.maximum(y, 0.0) * s[...] + t[...]

        out_ref[...] = y.astype(out_ref.dtype)

    return kernel


# ----------------------------------------------------------------------------
# Gene forward (eval mode): single pallas_call, batch-tiled parallel grid
# ----------------------------------------------------------------------------
@functools.partial(jax.jit, static_argnames=("batch_tile",))
def gene_forward(x_categorical, x_numerical, params, *, batch_tile=128):
    tables = params["tables"]
    layers = params["layers"]
    n_cat = len(tables)
    n_layers = len(layers)

    emb_dim = sum(t.shape[1] for t in tables)
    total_ni = sum(t.shape[0] for t in tables)
    num_dim = x_numerical.shape[1]
    batch = x_categorical.shape[0]
    out_dim = layers[-1]["w"].shape[1]

    # Block-diagonal embedding table (built once; tiny, stays resident in VMEM).
    bdiag = jnp.zeros((total_ni, emb_dim), jnp.float32)
    row_off, col_off, offsets = 0, 0, []
    for t in tables:
        ni, nf = t.shape
        bdiag = bdiag.at[row_off:row_off + ni, col_off:col_off + nf].set(t)
        offsets.append(row_off)
        row_off += ni
        col_off += nf
    offsets = jnp.array(offsets, jnp.int32)
    idx_off = x_categorical.astype(jnp.int32) + offsets[None, :]

    # Split the first layer's weight so the concat never materializes.
    w0 = layers[0]["w"]
    w_e = w0[:emb_dim, :]
    w_n = w0[emb_dim:, :]

    # Pre-fold BatchNorm (eval, running stats) into a single scale/shift.
    def fold(layer):
        scale = layer["gamma"] * jax.lax.rsqrt(layer["var"] + 1e-5)
        shift = layer["beta"] - layer["mean"] * scale
        return scale, shift

    flat_params = []
    s0, t0 = fold(layers[0])
    flat_params += [layers[0]["b"], s0, t0]
    for layer in layers[1:]:
        s, t = fold(layer)
        flat_params += [layer["w"], layer["b"], s, t]

    tb = min(batch_tile, batch)
    n_blocks = pl.cdiv(batch, tb)

    def resident(shape):
        # Weight-like operand: same block for every grid step -> stays in VMEM.
        return pl.BlockSpec(shape, lambda i: tuple(0 for _ in shape))

    in_specs = [
        pl.BlockSpec((tb, n_cat), lambda i: (i, 0)),     # offset indices
        pl.BlockSpec((tb, num_dim), lambda i: (i, 0)),   # numerical features
        resident((total_ni, emb_dim)),                   # block-diag table
        resident(w_e.shape),                             # layer-0 weight (emb part)
        resident(w_n.shape),                             # layer-0 weight (num part)
    ] + [resident(p.shape) for p in flat_params]

    out_specs = pl.BlockSpec((tb, out_dim), lambda i: (i, 0))

    grid_spec = pltpu.PrefetchScalarGridSpec(
        num_scalar_prefetch=0,
        grid=(n_blocks,),
        in_specs=in_specs,
        out_specs=out_specs,
    )

    return pl.pallas_call(
        _make_fused_kernel(n_layers, n_cat),
        out_shape=jax.ShapeDtypeStruct((batch, out_dim), jnp.float32),
        grid_spec=grid_spec,
        compiler_params=pltpu.CompilerParams(
            dimension_semantics=("parallel",),
            vmem_limit_bytes=64 * 1024 * 1024,
        ),
    )(idx_off, x_numerical, bdiag, w_e, w_n, *flat_params)


# ----------------------------------------------------------------------------
# Reference (pure JAX) for verification
# ----------------------------------------------------------------------------
def gene_forward_ref(x_categorical, x_numerical, params):
    embs = [params["tables"][i][x_categorical[:, i]]
            for i in range(len(params["tables"]))]
    x = jnp.concatenate(embs + [x_numerical], axis=1)
    for layer in params["layers"]:
        y = x @ layer["w"] + layer["b"]
        y = jnp.maximum(y, 0.0)
        y = (y - layer["mean"]) / jnp.sqrt(layer["var"] + 1e-5)
        y = y * layer["gamma"] + layer["beta"]
        x = y
    return x


# ----------------------------------------------------------------------------
# Deterministic parameter construction
# ----------------------------------------------------------------------------
def make_params(key, qualitative_embeddings, num_numerical, layer_dims):
    keys = jax.random.split(key, 64)
    k_it = iter(keys)

    tables = tuple(
        (jax.random.normal(next(k_it), (ni, nf), jnp.float32) * 0.1)
        for ni, nf in qualitative_embeddings
    )

    input_size = sum(nf for _, nf in qualitative_embeddings) + num_numerical
    layers = []
    for out_dim in layer_dims:
        w = jax.random.normal(next(k_it), (input_size, out_dim),
                              jnp.float32) * (1.0 / jnp.sqrt(input_size))
        b = jax.random.normal(next(k_it), (1, out_dim), jnp.float32) * 0.05
        gamma = 1.0 + 0.1 * jax.random.normal(next(k_it), (1, out_dim),
                                              jnp.float32)
        beta = 0.05 * jax.random.normal(next(k_it), (1, out_dim), jnp.float32)
        mean = 0.1 * jax.random.normal(next(k_it), (1, out_dim), jnp.float32)
        var = jnp.abs(1.0 + 0.1 * jax.random.normal(next(k_it), (1, out_dim),
                                                    jnp.float32))
        layers.append(dict(w=w, b=b, gamma=gamma, beta=beta,
                           mean=mean, var=var))
        input_size = out_dim
    return dict(tables=tables, layers=tuple(layers))


if __name__ == "__main__":
    key = jax.random.PRNGKey(0)
    k_param, k_cat, k_num = jax.random.split(key, 3)

    # Small synthetic config consistent with the module:
    #   qualitative_embeddings = [(5,3), (7,4), (4,2)]  -> 9 embedding features
    #   quantitative features  = 7                      -> input_size = 16
    #   layers_dimensions      = [32, 16, 4]
    qualitative_embeddings = [(5, 3), (7, 4), (4, 2)]
    num_numerical = 7
    layer_dims = [32, 16, 4]
    batch = 256          # multiple of the 128-row batch tile

    params = make_params(k_param, qualitative_embeddings, num_numerical,
                         layer_dims)

    maxes = jnp.array([ni for ni, _ in qualitative_embeddings], jnp.int32)
    x_categorical = (
        jax.random.randint(k_cat, (batch, len(qualitative_embeddings)),
                           0, 1000, jnp.int32) % maxes[None, :]
    ).astype(jnp.int32)
    x_numerical = jax.random.normal(k_num, (batch, num_numerical), jnp.float32)

    out = gene_forward(x_categorical, x_numerical, params, batch_tile=128)
    out = jax.block_until_ready(out)

    ref = gene_forward_ref(x_categorical, x_numerical, params)
    assert out.shape == (batch, layer_dims[-1])
    assert jnp.allclose(out, ref, atol=1e-4, rtol=1e-4), "mismatch vs reference"

    print("KERNEL_OK")
</pallas_src>

<mosaic_0001>
module attributes {stable_mosaic.version = 11 : i64} {
  func.func @kernel(%arg0: i32, %arg1: memref<128x3xi32, #tpu.memory_space<vmem>>, %arg2: memref<128x7xf32, #tpu.memory_space<vmem>>, %arg3: memref<16x9xf32, #tpu.memory_space<vmem>>, %arg4: memref<9x32xf32, #tpu.memory_space<vmem>>, %arg5: memref<7x32xf32, #tpu.memory_space<vmem>>, %arg6: memref<1x32xf32, #tpu.memory_space<vmem>>, %arg7: memref<1x32xf32, #tpu.memory_space<vmem>>, %arg8: memref<1x32xf32, #tpu.memory_space<vmem>>, %arg9: memref<32x16xf32, #tpu.memory_space<vmem>>, %arg10: memref<1x16xf32, #tpu.memory_space<vmem>>, %arg11: memref<1x16xf32, #tpu.memory_space<vmem>>, %arg12: memref<1x16xf32, #tpu.memory_space<vmem>>, %arg13: memref<16x4xf32, #tpu.memory_space<vmem>>, %arg14: memref<1x4xf32, #tpu.memory_space<vmem>>, %arg15: memref<1x4xf32, #tpu.memory_space<vmem>>, %arg16: memref<1x4xf32, #tpu.memory_space<vmem>>, %arg17: memref<128x4xf32, #tpu.memory_space<vmem>>) attributes {dimension_semantics = [#tpu.dimension_semantics<parallel>], iteration_bounds = array<i64: 2>, scalar_prefetch = 0 : i64, scratch_operands = 0 : i64, tpu.core_type = #tpu.core_type<tc>, window_params = [{transform_indices = @transform_0, window_bounds = array<i64: 128, 3>}, {transform_indices = @transform_1, window_bounds = array<i64: 128, 7>}, {pipeline_mode = #tpu.pipeline_mode<synchronous>, transform_indices = @transform_2, window_bounds = array<i64: 16, 9>}, {pipeline_mode = #tpu.pipeline_mode<synchronous>, transform_indices = @transform_3, window_bounds = array<i64: 9, 32>}, {pipeline_mode = #tpu.pipeline_mode<synchronous>, transform_indices = @transform_4, window_bounds = array<i64: 7, 32>}, {pipeline_mode = #tpu.pipeline_mode<synchronous>, transform_indices = @transform_5, window_bounds = array<i64: 1, 32>}, {pipeline_mode = #tpu.pipeline_mode<synchronous>, transform_indices = @transform_6, window_bounds = array<i64: 1, 32>}, {pipeline_mode = #tpu.pipeline_mode<synchronous>, transform_indices = @transform_7, window_bounds = array<i64: 1, 32>}, {pipeline_mode = #tpu.pipeline_mode<synchronous>, transform_indices = @transform_8, window_bounds = array<i64: 32, 16>}, {pipeline_mode = #tpu.pipeline_mode<synchronous>, transform_indices = @transform_9, window_bounds = array<i64: 1, 16>}, {pipeline_mode = #tpu.pipeline_mode<synchronous>, transform_indices = @transform_10, window_bounds = array<i64: 1, 16>}, {pipeline_mode = #tpu.pipeline_mode<synchronous>, transform_indices = @transform_11, window_bounds = array<i64: 1, 16>}, {pipeline_mode = #tpu.pipeline_mode<synchronous>, transform_indices = @transform_12, window_bounds = array<i64: 16, 4>}, {pipeline_mode = #tpu.pipeline_mode<synchronous>, transform_indices = @transform_13, window_bounds = array<i64: 1, 4>}, {pipeline_mode = #tpu.pipeline_mode<synchronous>, transform_indices = @transform_14, window_bounds = array<i64: 1, 4>}, {pipeline_mode = #tpu.pipeline_mode<synchronous>, transform_indices = @transform_15, window_bounds = array<i64: 1, 4>}, {transform_indices = @transform_16, window_bounds = array<i64: 128, 4>}]} {
    %c0 = arith.constant 0 : index
    %c0_0 = arith.constant 0 : index
    %0 = vector.load %arg1[%c0, %c0_0] : memref<128x3xi32, #tpu.memory_space<vmem>>, vector<128x3xi32>
    %1 = tpu.iota {dimensions = array<i32: 1>} : vector<128x16xi32>
    %cst = arith.constant 0.000000e+00 : f32
    %2 = vector.broadcast %cst : f32 to vector<128x16xf32>
    %3 = vector.extract_strided_slice %0 {offsets = [0, 0], sizes = [128, 1], strides = [1, 1]} : vector<128x3xi32> to vector<128x1xi32>
    %4 = vector.broadcast %3 : vector<128x1xi32> to vector<128x16xi32>
    %5 = arith.cmpi eq, %4, %1 : vector<128x16xi32>
    %6 = arith.extui %5 : vector<128x16xi1> to vector<128x16xi32>
    %7 = arith.sitofp %6 : vector<128x16xi32> to vector<128x16xf32>
    %8 = arith.addf %2, %7 : vector<128x16xf32>
    %9 = vector.extract_strided_slice %0 {offsets = [0, 1], sizes = [128, 1], strides = [1, 1]} : vector<128x3xi32> to vector<128x1xi32>
    %10 = vector.broadcast %9 : vector<128x1xi32> to vector<128x16xi32>
    %11 = arith.cmpi eq, %10, %1 : vector<128x16xi32>
    %12 = arith.extui %11 : vector<128x16xi1> to vector<128x16xi32>
    %13 = arith.sitofp %12 : vector<128x16xi32> to vector<128x16xf32>
    %14 = arith.addf %8, %13 : vector<128x16xf32>
    %15 = vector.extract_strided_slice %0 {offsets = [0, 2], sizes = [128, 1], strides = [1, 1]} : vector<128x3xi32> to vector<128x1xi32>
    %16 = vector.broadcast %15 : vector<128x1xi32> to vector<128x16xi32>
    %17 = arith.cmpi eq, %16, %1 : vector<128x16xi32>
    %18 = arith.extui %17 : vector<128x16xi1> to vector<128x16xi32>
    %19 = arith.sitofp %18 : vector<128x16xi32> to vector<128x16xf32>
    %20 = arith.addf %14, %19 : vector<128x16xf32>
    %c0_1 = arith.constant 0 : index
    %c0_2 = arith.constant 0 : index
    %21 = vector.load %arg3[%c0_1, %c0_2] : memref<16x9xf32, #tpu.memory_space<vmem>>, vector<16x9xf32>
    %cst_3 = arith.constant dense<0.000000e+00> : vector<128x9xf32>
    %22 = tpu.matmul %20, %21, %cst_3 {dimension_numbers = #tpu.dot_dimension_numbers<[1], [0], [0], [1], [0, 0, 1, 1], [], []>} : vector<128x16xf32>, vector<16x9xf32>, vector<128x9xf32> -> vector<128x9xf32>
    %c0_4 = arith.constant 0 : index
    %c0_5 = arith.constant 0 : index
    %23 = vector.load %arg4[%c0_4, %c0_5] : memref<9x32xf32, #tpu.memory_space<vmem>>, vector<9x32xf32>
    %cst_6 = arith.constant dense<0.000000e+00> : vector<128x32xf32>
    %24 = tpu.matmul %22, %23, %cst_6 {dimension_numbers = #tpu.dot_dimension_numbers<[1], [0], [0], [1], [0, 0, 1, 1], [], []>} : vector<128x9xf32>, vector<9x32xf32>, vector<128x32xf32> -> vector<128x32xf32>
    %c0_7 = arith.constant 0 : index
    %c0_8 = arith.constant 0 : index
    %25 = vector.load %arg2[%c0_7, %c0_8] : memref<128x7xf32, #tpu.memory_space<vmem>>, vector<128x7xf32>
    %c0_9 = arith.constant 0 : index
    %c0_10 = arith.constant 0 : index
    %26 = vector.load %arg5[%c0_9, %c0_10] : memref<7x32xf32, #tpu.memory_space<vmem>>, vector<7x32xf32>
    %cst_11 = arith.constant dense<0.000000e+00> : vector<128x32xf32>
    %27 = tpu.matmul %25, %26, %cst_11 {dimension_numbers = #tpu.dot_dimension_numbers<[1], [0], [0], [1], [0, 0, 1, 1], [], []>} : vector<128x7xf32>, vector<7x32xf32>, vector<128x32xf32> -> vector<128x32xf32>
    %28 = arith.addf %24, %27 : vector<128x32xf32>
    %c0_12 = arith.constant 0 : index
    %c0_13 = arith.constant 0 : index
    %29 = vector.load %arg6[%c0_12, %c0_13] : memref<1x32xf32, #tpu.memory_space<vmem>>, vector<1x32xf32>
    %30 = vector.broadcast %29 : vector<1x32xf32> to vector<128x32xf32>
    %31 = arith.addf %28, %30 : vector<128x32xf32>
    %cst_14 = arith.constant 0.000000e+00 : f32
    %32 = vector.broadcast %cst_14 : f32 to vector<128x32xf32>
    %33 = arith.maximumf %31, %32 : vector<128x32xf32>
    %c0_15 = arith.constant 0 : index
    %c0_16 = arith.constant 0 : index
    %34 = vector.load %arg7[%c0_15, %c0_16] : memref<1x32xf32, #tpu.memory_space<vmem>>, vector<1x32xf32>
    %35 = vector.broadcast %34 : vector<1x32xf32> to vector<128x32xf32>
    %36 = arith.mulf %33, %35 : vector<128x32xf32>
    %c0_17 = arith.constant 0 : index
    %c0_18 = arith.constant 0 : index
    %37 = vector.load %arg8[%c0_17, %c0_18] : memref<1x32xf32, #tpu.memory_space<vmem>>, vector<1x32xf32>
    %38 = vector.broadcast %37 : vector<1x32xf32> to vector<128x32xf32>
    %39 = arith.addf %36, %38 : vector<128x32xf32>
    %c0_19 = arith.constant 0 : index
    %c0_20 = arith.constant 0 : index
    %40 = vector.load %arg9[%c0_19, %c0_20] : memref<32x16xf32, #tpu.memory_space<vmem>>, vector<32x16xf32>
    %cst_21 = arith.constant dense<0.000000e+00> : vector<128x16xf32>
    %41 = tpu.matmul %39, %40, %cst_21 {dimension_numbers = #tpu.dot_dimension_numbers<[1], [0], [0], [1], [0, 0, 1, 1], [], []>} : vector<128x32xf32>, vector<32x16xf32>, vector<128x16xf32> -> vector<128x16xf32>
    %c0_22 = arith.constant 0 : index
    %c0_23 = arith.constant 0 : index
    %42 = vector.load %arg10[%c0_22, %c0_23] : memref<1x16xf32, #tpu.memory_space<vmem>>, vector<1x16xf32>
    %43 = vector.broadcast %42 : vector<1x16xf32> to vector<128x16xf32>
    %44 = arith.addf %41, %43 : vector<128x16xf32>
    %cst_24 = arith.constant 0.000000e+00 : f32
    %45 = vector.broadcast %cst_24 : f32 to vector<128x16xf32>
    %46 = arith.maximumf %44, %45 : vector<128x16xf32>
    %c0_25 = arith.constant 0 : index
    %c0_26 = arith.constant 0 : index
    %47 = vector.load %arg11[%c0_25, %c0_26] : memref<1x16xf32, #tpu.memory_space<vmem>>, vector<1x16xf32>
    %48 = vector.broadcast %47 : vector<1x16xf32> to vector<128x16xf32>
    %49 = arith.mulf %46, %48 : vector<128x16xf32>
    %c0_27 = arith.constant 0 : index
    %c0_28 = arith.constant 0 : index
    %50 = vector.load %arg12[%c0_27, %c0_28] : memref<1x16xf32, #tpu.memory_space<vmem>>, vector<1x16xf32>
    %51 = vector.broadcast %50 : vector<1x16xf32> to vector<128x16xf32>
    %52 = arith.addf %49, %51 : vector<128x16xf32>
    %c0_29 = arith.constant 0 : index
    %c0_30 = arith.constant 0 : index
    %53 = vector.load %arg13[%c0_29, %c0_30] : memref<16x4xf32, #tpu.memory_space<vmem>>, vector<16x4xf32>
    %cst_31 = arith.constant dense<0.000000e+00> : vector<128x4xf32>
    %54 = tpu.matmul %52, %53, %cst_31 {dimension_numbers = #tpu.dot_dimension_numbers<[1], [0], [0], [1], [0, 0, 1, 1], [], []>} : vector<128x16xf32>, vector<16x4xf32>, vector<128x4xf32> -> vector<128x4xf32>
    %c0_32 = arith.constant 0 : index
    %c0_33 = arith.constant 0 : index
    %55 = vector.load %arg14[%c0_32, %c0_33] : memref<1x4xf32, #tpu.memory_space<vmem>>, vector<1x4xf32>
    %56 = vector.broadcast %55 : vector<1x4xf32> to vector<128x4xf32>
    %57 = arith.addf %54, %56 : vector<128x4xf32>
    %cst_34 = arith.constant 0.000000e+00 : f32
    %58 = vector.broadcast %cst_34 : f32 to vector<128x4xf32>
    %59 = arith.maximumf %57, %58 : vector<128x4xf32>
    %c0_35 = arith.constant 0 : index
    %c0_36 = arith.constant 0 : index
    %60 = vector.load %arg15[%c0_35, %c0_36] : memref<1x4xf32, #tpu.memory_space<vmem>>, vector<1x4xf32>
    %61 = vector.broadcast %60 : vector<1x4xf32> to vector<128x4xf32>
    %62 = arith.mulf %59, %61 : vector<128x4xf32>
    %c0_37 = arith.constant 0 : index
    %c0_38 = arith.constant 0 : index
    %63 = vector.load %arg16[%c0_37, %c0_38] : memref<1x4xf32, #tpu.memory_space<vmem>>, vector<1x4xf32>
    %64 = vector.broadcast %63 : vector<1x4xf32> to vector<128x4xf32>
    %65 = arith.addf %62, %64 : vector<128x4xf32>
    %c0_39 = arith.constant 0 : index
    %c0_40 = arith.constant 0 : index
    %66 = vector.load %arg17[%c0_39, %c0_40] : memref<128x4xf32, #tpu.memory_space<vmem>>, vector<128x4xf32>
    tpu.vector_store %arg17[%c0_39, %c0_40], %65 {strides = array<i32>} : memref<128x4xf32, #tpu.memory_space<vmem>>, vector<128x4xf32>,
    return
  }
  func.func @transform_0(%arg0: i32) -> (i32, i32) {
    %c0_i32 = arith.constant 0 : i32
    %c0_i32_0 = arith.constant 0 : i32
    return %arg0, %c0_i32 : i32, i32
  }
  func.func @transform_1(%arg0: i32) -> (i32, i32) {
    %c0_i32 = arith.constant 0 : i32
    %c0_i32_0 = arith.constant 0 : i32
    return %arg0, %c0_i32 : i32, i32
  }
  func.func @transform_2(%arg0: i32) -> (i32, i32) {
    %c0_i32 = arith.constant 0 : i32
    %c0_i32_0 = arith.constant 0 : i32
    %c0_i32_1 = arith.constant 0 : i32
    return %c0_i32, %c0_i32_0 : i32, i32
  }
  func.func @transform_3(%arg0: i32) -> (i32, i32) {
    %c0_i32 = arith.constant 0 : i32
    %c0_i32_0 = arith.constant 0 : i32
    %c0_i32_1 = arith.constant 0 : i32
    return %c0_i32, %c0_i32_0 : i32, i32
  }
  func.func @transform_4(%arg0: i32) -> (i32, i32) {
    %c0_i32 = arith.constant 0 : i32
    %c0_i32_0 = arith.constant 0 : i32
    %c0_i32_1 = arith.constant 0 : i32
    return %c0_i32, %c0_i32_0 : i32, i32
  }
  func.func @transform_5(%arg0: i32) -> (i32, i32) {
    %c0_i32 = arith.constant 0 : i32
    %c0_i32_0 = arith.constant 0 : i32
    %c0_i32_1 = arith.constant 0 : i32
    return %c0_i32, %c0_i32_0 : i32, i32
  }
  func.func @transform_6(%arg0: i32) -> (i32, i32) {
    %c0_i32 = arith.constant 0 : i32
    %c0_i32_0 = arith.constant 0 : i32
    %c0_i32_1 = arith.constant 0 : i32
    return %c0_i32, %c0_i32_0 : i32, i32
  }
  func.func @transform_7(%arg0: i32) -> (i32, i32) {
    %c0_i32 = arith.constant 0 : i32
    %c0_i32_0 = arith.constant 0 : i32
    %c0_i32_1 = arith.constant 0 : i32
    return %c0_i32, %c0_i32_0 : i32, i32
  }
  func.func @transform_8(%arg0: i32) -> (i32, i32) {
    %c0_i32 = arith.constant 0 : i32
    %c0_i32_0 = arith.constant 0 : i32
    %c0_i32_1 = arith.constant 0 : i32
    return %c0_i32, %c0_i32_0 : i32, i32
  }
  func.func @transform_9(%arg0: i32) -> (i32, i32) {
    %c0_i32 = arith.constant 0 : i32
    %c0_i32_0 = arith.constant 0 : i32
    %c0_i32_1 = arith.constant 0 : i32
    return %c0_i32, %c0_i32_0 : i32, i32
  }
  func.func @transform_10(%arg0: i32) -> (i32, i32) {
    %c0_i32 = arith.constant 0 : i32
    %c0_i32_0 = arith.constant 0 : i32
    %c0_i32_1 = arith.constant 0 : i32
    return %c0_i32, %c0_i32_0 : i32, i32
  }
  func.func @transform_11(%arg0: i32) -> (i32, i32) {
    %c0_i32 = arith.constant 0 : i32
    %c0_i32_0 = arith.constant 0 : i32
    %c0_i32_1 = arith.constant 0 : i32
    return %c0_i32, %c0_i32_0 : i32, i32
  }
  func.func @transform_12(%arg0: i32) -> (i32, i32) {
    %c0_i32 = arith.constant 0 : i32
    %c0_i32_0 = arith.constant 0 : i32
    %c0_i32_1 = arith.constant 0 : i32
    return %c0_i32, %c0_i32_0 : i32, i32
  }
  func.func @transform_13(%arg0: i32) -> (i32, i32) {
    %c0_i32 = arith.constant 0 : i32
    %c0_i32_0 = arith.constant 0 : i32
    %c0_i32_1 = arith.constant 0 : i32
    return %c0_i32, %c0_i32_0 : i32, i32
  }
  func.func @transform_14(%arg0: i32) -> (i32, i32) {
    %c0_i32 = arith.constant 0 : i32
    %c0_i32_0 = arith.constant 0 : i32
    %c0_i32_1 = arith.constant 0 : i32
    return %c0_i32, %c0_i32_0 : i32, i32
  }
  func.func @transform_15(%arg0: i32) -> (i32, i32) {
    %c0_i32 = arith.constant 0 : i32
    %c0_i32_0 = arith.constant 0 : i32
    %c0_i32_1 = arith.constant 0 : i32
    return %c0_i32, %c0_i32_0 : i32, i32
  }
  func.func @transform_16(%arg0: i32) -> (i32, i32) {
    %c0_i32 = arith.constant 0 : i32
    %c0_i32_0 = arith.constant 0 : i32
    return %arg0, %c0_i32 : i32, i32
  }
}

</mosaic_0001>

<llo_original>
// kernel: gene_forward.1
$region0: #{gene_forward.1}
  #allocation0 [shape = 'u32[]', space=smem, size = 0x4, offset = 0x4, fixed_abs, tag = 'smem constant byte address 0x4 - core index']
  #allocation1 [shape = 'u32[72,128]{1,0:T(1,128)}', space=vmem, size = 0x9000, scoped, tag = 'internal scratch']
  %s0 = inlined_call_operand.vmem [shape: s32[256,3], index: 0, kind: input, shape index: {}]
  %s1 = inlined_call_operand.vmem [shape: f32[256,7], index: 1, kind: input, shape index: {}]
  %s2 = inlined_call_operand.vmem [shape: f32[16,9], index: 2, kind: input, shape index: {}]
  %s3 = inlined_call_operand.vmem [shape: f32[9,32], index: 3, kind: input, shape index: {}]
  %s4 = inlined_call_operand.vmem [shape: f32[7,32], index: 4, kind: input, shape index: {}]
  %s5 = inlined_call_operand.vmem [shape: f32[1,32], index: 5, kind: input, shape index: {}]
  %s6 = inlined_call_operand.vmem [shape: f32[1,32], index: 6, kind: input, shape index: {}]
  %s7 = inlined_call_operand.vmem [shape: f32[1,32], index: 7, kind: input, shape index: {}]
  %s8 = inlined_call_operand.vmem [shape: f32[32,16], index: 8, kind: input, shape index: {}]
  %s9 = inlined_call_operand.vmem [shape: f32[1,16], index: 9, kind: input, shape index: {}]
  %s10 = inlined_call_operand.vmem [shape: f32[1,16], index: 10, kind: input, shape index: {}]
  %s11 = inlined_call_operand.vmem [shape: f32[1,16], index: 11, kind: input, shape index: {}]
  %s12 = inlined_call_operand.vmem [shape: f32[16,4], index: 12, kind: input, shape index: {}]
  %s13 = inlined_call_operand.vmem [shape: f32[1,4], index: 13, kind: input, shape index: {}]
  %s14 = inlined_call_operand.vmem [shape: f32[1,4], index: 14, kind: input, shape index: {}]
  %s15 = inlined_call_operand.vmem [shape: f32[1,4], index: 15, kind: input, shape index: {}]
  %s16 = inlined_call_operand.vmem [shape: f32[256,4], index: 16, kind: output, shape index: {}]
  %s17 = sld [smem:[#allocation0]]
  $region97: #{gene_forward.1} parent=0
    _
  %s19 = ssub.s32 1, %s17
  %s20 = scalar_select 0, %s19, %s17
  loop: start=0, step=1, limit=4
  $region2: #{gene_forward.1} parent=0 // loop_pre_header
    _
  $region3: #{gene_forward.1} parent=0 // loop_header
    %s22 = sphi 0, %s26
    %p23 = scmp.ge.s32.totalorder %s22, 4
    %s32 = sphi 0, %s34
    %s35 = sphi 0, %s32
    %s36 = sphi 0, %s35
    %s52 = sphi 0, %s36
    %s58 = sphi 0, %s60
    %s61 = sphi 0, %s58
    %s62 = sphi 0, %s61
    %s78 = sphi 0, %s62
    %s82 = sphi 0, %s82
    %s84 = sphi 0, %s82
    %s85 = sphi 0, %s84
    %s99 = sphi 0, %s85
    %s103 = sphi 0, %s103
    %s105 = sphi 0, %s103
    %s106 = sphi 0, %s105
    %s120 = sphi 0, %s106
    %s124 = sphi 0, %s124
    %s126 = sphi 0, %s124
    %s127 = sphi 0, %s126
    %s141 = sphi 0, %s127
    %s145 = sphi 0, %s145
    %s147 = sphi 0, %s145
    %s148 = sphi 0, %s147
    %s162 = sphi 0, %s148
    %s166 = sphi 0, %s166
    %s168 = sphi 0, %s166
    %s169 = sphi 0, %s168
    %s183 = sphi 0, %s169
    %s187 = sphi 0, %s187
    %s189 = sphi 0, %s187
    %s190 = sphi 0, %s189
    %s204 = sphi 0, %s190
    %s208 = sphi 0, %s208
    %s210 = sphi 0, %s208
    %s211 = sphi 0, %s210
    %s225 = sphi 0, %s211
    %s229 = sphi 0, %s229
    %s231 = sphi 0, %s229
    %s232 = sphi 0, %s231
    %s246 = sphi 0, %s232
    %s250 = sphi 0, %s250
    %s252 = sphi 0, %s250
    %s253 = sphi 0, %s252
    %s267 = sphi 0, %s253
    %s271 = sphi 0, %s271
    %s273 = sphi 0, %s271
    %s274 = sphi 0, %s273
    %s288 = sphi 0, %s274
    %s292 = sphi 0, %s292
    %s294 = sphi 0, %s292
    %s295 = sphi 0, %s294
    %s309 = sphi 0, %s295
    %s313 = sphi 0, %s313
    %s315 = sphi 0, %s313
    %s316 = sphi 0, %s315
    %s330 = sphi 0, %s316
    %s334 = sphi 0, %s334
    %s336 = sphi 0, %s334
    %s337 = sphi 0, %s336
    %s351 = sphi 0, %s337
    %s355 = sphi 0, %s355
    %s357 = sphi 0, %s355
    %s358 = sphi 0, %s357
    %s372 = sphi 0, %s358
    %s378 = sphi 0, %s380
    %s381 = sphi 0, %s378
    %s382 = sphi 0, %s381
    %s398 = sphi 0, %s382
  $region4: #{gene_forward.1} parent=0 // loop_header_branch
    %25 = sbr.rel (%p23) target = $region8
  $region5: #{gene_forward.1} parent=0 // loop_body
    %s27 = ssub.s32 %s22, 1
    %s28 = ssub.s32 %s22, 2
    %s29 = sadd.s32 %s22, 1
    %s30 = ssub.s32 %s22, %s29
    %p31 = scmp.eq.s32.totalorder %s30, 0
    %s33 = sadd.s32 %s32, 1
    %s34 = scalar_select %p31, %s32, %s33
    %p37 = pneg %p31
    %p38 = scmp.eq.s32.totalorder %s22, 1
    %p39 = por %p37, %p38
    %p40 = scmp.ne.s32.totalorder %s32, %s35
    %p41 = scmp.eq.s32.totalorder %s22, 0
    %p42 = por %p40, %p41
    %p43 = scmp.ne.s32.totalorder %s32, %s35
    %p44 = scmp.eq.s32.totalorder %s27, 1
    %p45 = por %p43, %p44
    %p46 = scmp.ne.s32.totalorder %s35, %s36
    %p47 = scmp.eq.s32.totalorder %s27, 0
    %p48 = por %p46, %p47
    %p49 = scmp.ne.s32.totalorder %s35, %s36
    %p50 = scmp.eq.s32.totalorder %s28, 1
    %p51 = por %p49, %p50
    %p53 = scmp.ne.s32.totalorder %s36, %s52
    %p54 = scmp.eq.s32.totalorder %s28, 0
    %p55 = por %p53, %p54
    %s56 = ssub.s32 %s22, %s29
    %p57 = scmp.eq.s32.totalorder %s56, 0
    %s59 = sadd.s32 %s58, 1
    %s60 = scalar_select %p57, %s58, %s59
    %p63 = pneg %p57
    %p64 = scmp.eq.s32.totalorder %s22, 1
    %p65 = por %p63, %p64
    %p66 = scmp.ne.s32.totalorder %s58, %s61
    %p67 = scmp.eq.s32.totalorder %s22, 0
    %p68 = por %p66, %p67
    %p69 = scmp.ne.s32.totalorder %s58, %s61
    %p70 = scmp.eq.s32.totalorder %s27, 1
    %p71 = por %p69, %p70
    %p72 = scmp.ne.s32.totalorder %s61, %s62
    %p73 = scmp.eq.s32.totalorder %s27, 0
    %p74 = por %p72, %p73
    %p75 = scmp.ne.s32.totalorder %s61, %s62
    %p76 = scmp.eq.s32.totalorder %s28, 1
    %p77 = por %p75, %p76
    %p79 = scmp.ne.s32.totalorder %s62, %s78
    %p80 = scmp.eq.s32.totalorder %s28, 0
    %p81 = por %p79, %p80
    %s83 = sadd.s32 %s82, 1
    %p86 = scmp.eq.s32.totalorder %s22, 1
    %p87 = scmp.ne.s32.totalorder %s82, %s84
    %p88 = scmp.eq.s32.totalorder %s22, 0
    %p89 = por %p87, %p88
    %p90 = scmp.ne.s32.totalorder %s82, %s84
    %p91 = scmp.eq.s32.totalorder %s27, 1
    %p92 = por %p90, %p91
    %p93 = scmp.ne.s32.totalorder %s84, %s85
    %p94 = scmp.eq.s32.totalorder %s27, 0
    %p95 = por %p93, %p94
    %p96 = scmp.ne.s32.totalorder %s84, %s85
    %p97 = scmp.eq.s32.totalorder %s28, 1
    %p98 = por %p96, %p97
    %p100 = scmp.ne.s32.totalorder %s85, %s99
    %p101 = scmp.eq.s32.totalorder %s28, 0
    %p102 = por %p100, %p101
    %s104 = sadd.s32 %s103, 1
    %p107 = scmp.eq.s32.totalorder %s22, 1
    %p108 = scmp.ne.s32.totalorder %s103, %s105
    %p109 = scmp.eq.s32.totalorder %s22, 0
    %p110 = por %p108, %p109
    %p111 = scmp.ne.s32.totalorder %s103, %s105
    %p112 = scmp.eq.s32.totalorder %s27, 1
    %p113 = por %p111, %p112
    %p114 = scmp.ne.s32.totalorder %s105, %s106
    %p115 = scmp.eq.s32.totalorder %s27, 0
    %p116 = por %p114, %p115
    %p117 = scmp.ne.s32.totalorder %s105, %s106
    %p118 = scmp.eq.s32.totalorder %s28, 1
    %p119 = por %p117, %p118
    %p121 = scmp.ne.s32.totalorder %s106, %s120
    %p122 = scmp.eq.s32.totalorder %s28, 0
    %p123 = por %p121, %p122
    %s125 = sadd.s32 %s124, 1
    %p128 = scmp.eq.s32.totalorder %s22, 1
    %p129 = scmp.ne.s32.totalorder %s124, %s126
    %p130 = scmp.eq.s32.totalorder %s22, 0
    %p131 = por %p129, %p130
    %p132 = scmp.ne.s32.totalorder %s124, %s126
    %p133 = scmp.eq.s32.totalorder %s27, 1
    %p134 = por %p132, %p133
    %p135 = scmp.ne.s32.totalorder %s126, %s127
    %p136 = scmp.eq.s32.totalorder %s27, 0
    %p137 = por %p135, %p136
    %p138 = scmp.ne.s32.totalorder %s126, %s127
    %p139 = scmp.eq.s32.totalorder %s28, 1
    %p140 = por %p138, %p139
    %p142 = scmp.ne.s32.totalorder %s127, %s141
    %p143 = scmp.eq.s32.totalorder %s28, 0
    %p144 = por %p142, %p143
    %s146 = sadd.s32 %s145, 1
    %p149 = scmp.eq.s32.totalorder %s22, 1
    %p150 = scmp.ne.s32.totalorder %s145, %s147
    %p151 = scmp.eq.s32.totalorder %s22, 0
    %p152 = por %p150, %p151
    %p153 = scmp.ne.s32.totalorder %s145, %s147
    %p154 = scmp.eq.s32.totalorder %s27, 1
    %p155 = por %p153, %p154
    %p156 = scmp.ne.s32.totalorder %s147, %s148
    %p157 = scmp.eq.s32.totalorder %s27, 0
    %p158 = por %p156, %p157
    %p159 = scmp.ne.s32.totalorder %s147, %s148
    %p160 = scmp.eq.s32.totalorder %s28, 1
    %p161 = por %p159, %p160
    %p163 = scmp.ne.s32.totalorder %s148, %s162
    %p164 = scmp.eq.s32.totalorder %s28, 0
    %p165 = por %p163, %p164
    %s167 = sadd.s32 %s166, 1
    %p170 = scmp.eq.s32.totalorder %s22, 1
    %p171 = scmp.ne.s32.totalorder %s166, %s168
    %p172 = scmp.eq.s32.totalorder %s22, 0
    %p173 = por %p171, %p172
    %p174 = scmp.ne.s32.totalorder %s166, %s168
    %p175 = scmp.eq.s32.totalorder %s27, 1
    %p176 = por %p174, %p175
    %p177 = scmp.ne.s32.totalorder %s168, %s169
    %p178 = scmp.eq.s32.totalorder %s27, 0
    %p179 = por %p177, %p178
    %p180 = scmp.ne.s32.totalorder %s168, %s169
    %p181 = scmp.eq.s32.totalorder %s28, 1
    %p182 = por %p180, %p181
    %p184 = scmp.ne.s32.totalorder %s169, %s183
    %p185 = scmp.eq.s32.totalorder %s28, 0
    %p186 = por %p184, %p185
    %s188 = sadd.s32 %s187, 1
    %p191 = scmp.eq.s32.totalorder %s22, 1
    %p192 = scmp.ne.s32.totalorder %s187, %s189
    %p193 = scmp.eq.s32.totalorder %s22, 0
    %p194 = por %p192, %p193
    %p195 = scmp.ne.s32.totalorder %s187, %s189
    %p196 = scmp.eq.s32.totalorder %s27, 1
    %p197 = por %p195, %p196
    %p198 = scmp.ne.s32.totalorder %s189, %s190
    %p199 = scmp.eq.s32.totalorder %s27, 0
    %p200 = por %p198, %p199
    %p201 = scmp.ne.s32.totalorder %s189, %s190
    %p202 = scmp.eq.s32.totalorder %s28, 1
    %p203 = por %p201, %p202
    %p205 = scmp.ne.s32.totalorder %s190, %s204
    %p206 = scmp.eq.s32.totalorder %s28, 0
    %p207 = por %p205, %p206
    %s209 = sadd.s32 %s208, 1
    %p212 = scmp.eq.s32.totalorder %s22, 1
    %p213 = scmp.ne.s32.totalorder %s208, %s210
    %p214 = scmp.eq.s32.totalorder %s22, 0
    %p215 = por %p213, %p214
    %p216 = scmp.ne.s32.totalorder %s208, %s210
    %p217 = scmp.eq.s32.totalorder %s27, 1
    %p218 = por %p216, %p217
    %p219 = scmp.ne.s32.totalorder %s210, %s211
    %p220 = scmp.eq.s32.totalorder %s27, 0
    %p221 = por %p219, %p220
    %p222 = scmp.ne.s32.totalorder %s210, %s211
    %p223 = scmp.eq.s32.totalorder %s28, 1
    %p224 = por %p222, %p223
    %p226 = scmp.ne.s32.totalorder %s211, %s225
    %p227 = scmp.eq.s32.totalorder %s28, 0
    %p228 = por %p226, %p227
    %s230 = sadd.s32 %s229, 1
    %p233 = scmp.eq.s32.totalorder %s22, 1
    %p234 = scmp.ne.s32.totalorder %s229, %s231
    %p235 = scmp.eq.s32.totalorder %s22, 0
    %p236 = por %p234, %p235
    %p237 = scmp.ne.s32.totalorder %s229, %s231
    %p238 = scmp.eq.s32.totalorder %s27, 1
    %p239 = por %p237, %p238
    %p240 = scmp.ne.s32.totalorder %s231, %s232
    %p241 = scmp.eq.s32.totalorder %s27, 0
    %p242 = por %p240, %p241
    %p243 = scmp.ne.s32.totalorder %s231, %s232
    %p244 = scmp.eq.s32.totalorder %s28, 1
    %p245 = por %p243, %p244
    %p247 = scmp.ne.s32.totalorder %s232, %s246
    %p248 = scmp.eq.s32.totalorder %s28, 0
    %p249 = por %p247, %p248
    %s251 = sadd.s32 %s250, 1
    %p254 = scmp.eq.s32.totalorder %s22, 1
    %p255 = scmp.ne.s32.totalorder %s250, %s252
    %p256 = scmp.eq.s32.totalorder %s22, 0
    %p257 = por %p255, %p256
    %p258 = scmp.ne.s32.totalorder %s250, %s252
    %p259 = scmp.eq.s32.totalorder %s27, 1
    %p260 = por %p258, %p259
    %p261 = scmp.ne.s32.totalorder %s252, %s253
    %p262 = scmp.eq.s32.totalorder %s27, 0
    %p263 = por %p261, %p262
    %p264 = scmp.ne.s32.totalorder %s252, %s253
    %p265 = scmp.eq.s32.totalorder %s28, 1
    %p266 = por %p264, %p265
    %p268 = scmp.ne.s32.totalorder %s253, %s267
    %p269 = scmp.eq.s32.totalorder %s28, 0
    %p270 = por %p268, %p269
    %s272 = sadd.s32 %s271, 1
    %p275 = scmp.eq.s32.totalorder %s22, 1
    %p276 = scmp.ne.s32.totalorder %s271, %s273
    %p277 = scmp.eq.s32.totalorder %s22, 0
    %p278 = por %p276, %p277
    %p279 = scmp.ne.s32.totalorder %s271, %s273
    %p280 = scmp.eq.s32.totalorder %s27, 1
    %p281 = por %p279, %p280
    %p282 = scmp.ne.s32.totalorder %s273, %s274
    %p283 = scmp.eq.s32.totalorder %s27, 0
    %p284 = por %p282, %p283
    %p285 = scmp.ne.s32.totalorder %s273, %s274
    %p286 = scmp.eq.s32.totalorder %s28, 1
    %p287 = por %p285, %p286
    %p289 = scmp.ne.s32.totalorder %s274, %s288
    %p290 = scmp.eq.s32.totalorder %s28, 0
    %p291 = por %p289, %p290
    %s293 = sadd.s32 %s292, 1
    %p296 = scmp.eq.s32.totalorder %s22, 1
    %p297 = scmp.ne.s32.totalorder %s292, %s294
    %p298 = scmp.eq.s32.totalorder %s22, 0
    %p299 = por %p297, %p298
    %p300 = scmp.ne.s32.totalorder %s292, %s294
    %p301 = scmp.eq.s32.totalorder %s27, 1
    %p302 = por %p300, %p301
    %p303 = scmp.ne.s32.totalorder %s294, %s295
    %p304 = scmp.eq.s32.totalorder %s27, 0
    %p305 = por %p303, %p304
    %p306 = scmp.ne.s32.totalorder %s294, %s295
    %p307 = scmp.eq.s32.totalorder %s28, 1
    %p308 = por %p306, %p307
    %p310 = scmp.ne.s32.totalorder %s295, %s309
    %p311 = scmp.eq.s32.totalorder %s28, 0
    %p312 = por %p310, %p311
    %s314 = sadd.s32 %s313, 1
    %p317 = scmp.eq.s32.totalorder %s22, 1
    %p318 = scmp.ne.s32.totalorder %s313, %s315
    %p319 = scmp.eq.s32.totalorder %s22, 0
    %p320 = por %p318, %p319
    %p321 = scmp.ne.s32.totalorder %s313, %s315
    %p322 = scmp.eq.s32.totalorder %s27, 1
    %p323 = por %p321, %p322
    %p324 = scmp.ne.s32.totalorder %s315, %s316
    %p325 = scmp.eq.s32.totalorder %s27, 0
    %p326 = por %p324, %p325
    %p327 = scmp.ne.s32.totalorder %s315, %s316
    %p328 = scmp.eq.s32.totalorder %s28, 1
    %p329 = por %p327, %p328
    %p331 = scmp.ne.s32.totalorder %s316, %s330
    %p332 = scmp.eq.s32.totalorder %s28, 0
    %p333 = por %p331, %p332
    %s335 = sadd.s32 %s334, 1
    %p338 = scmp.eq.s32.totalorder %s22, 1
    %p339 = scmp.ne.s32.totalorder %s334, %s336
    %p340 = scmp.eq.s32.totalorder %s22, 0
    %p341 = por %p339, %p340
    %p342 = scmp.ne.s32.totalorder %s334, %s336
    %p343 = scmp.eq.s32.totalorder %s27, 1
    %p344 = por %p342, %p343
    %p345 = scmp.ne.s32.totalorder %s336, %s337
    %p346 = scmp.eq.s32.totalorder %s27, 0
    %p347 = por %p345, %p346
    %p348 = scmp.ne.s32.totalorder %s336, %s337
    %p349 = scmp.eq.s32.totalorder %s28, 1
    %p350 = por %p348, %p349
    %p352 = scmp.ne.s32.totalorder %s337, %s351
    %p353 = scmp.eq.s32.totalorder %s28, 0
    %p354 = por %p352, %p353
    %s356 = sadd.s32 %s355, 1
    %p359 = scmp.eq.s32.totalorder %s22, 1
    %p360 = scmp.ne.s32.totalorder %s355, %s357
    %p361 = scmp.eq.s32.totalorder %s22, 0
    %p362 = por %p360, %p361
    %p363 = scmp.ne.s32.totalorder %s355, %s357
    %p364 = scmp.eq.s32.totalorder %s27, 1
    %p365 = por %p363, %p364
    %p366 = scmp.ne.s32.totalorder %s357, %s358
    %p367 = scmp.eq.s32.totalorder %s27, 0
    %p368 = por %p366, %p367
    %p369 = scmp.ne.s32.totalorder %s357, %s358
    %p370 = scmp.eq.s32.totalorder %s28, 1
    %p371 = por %p369, %p370
    %p373 = scmp.ne.s32.totalorder %s358, %s372
    %p374 = scmp.eq.s32.totalorder %s28, 0
    %p375 = por %p373, %p374
    %s376 = ssub.s32 %s22, %s29
    %p377 = scmp.eq.s32.totalorder %s376, 0
    %s379 = sadd.s32 %s378, 1
    %s380 = scalar_select %p377, %s378, %s379
    %p383 = pneg %p377
    %p384 = scmp.eq.s32.totalorder %s22, 1
    %p385 = por %p383, %p384
    %p386 = scmp.ne.s32.totalorder %s378, %s381
    %p387 = scmp.eq.s32.totalorder %s22, 0
    %p388 = por %p386, %p387
    %p389 = scmp.ne.s32.totalorder %s378, %s381
    %p390 = scmp.eq.s32.totalorder %s27, 1
    %p391 = por %p389, %p390
    %p392 = scmp.ne.s32.totalorder %s381, %s382
    %p393 = scmp.eq.s32.totalorder %s27, 0
    %p394 = por %p392, %p393
    %p395 = scmp.ne.s32.totalorder %s381, %s382
    %p396 = scmp.eq.s32.totalorder %s28, 1
    %p397 = por %p395, %p396
    %p399 = scmp.ne.s32.totalorder %s382, %s398
    %p400 = scmp.eq.s32.totalorder %s28, 0
    %p401 = por %p399, %p400
    %p402 = scmp.le.s32.totalorder 1, %s22
    %p403 = scmp.lt.s32.totalorder %s22, 3
    %p404 = pnand %p402, %p403
    %p405 = pneg %p404
    // Predicated region
    $region9: #{gene_forward.1} parent=5 // pred_check
      _
    $region10: #{gene_forward.1} parent=5 // pred_check_branch
      %407 = sbr.rel (%p404) target = $region12
    $region11: #{gene_forward.1} parent=5 // pred_region
      %s408 = ssub.s32 %s22, 1
      // Predicated region
      $region13: #{gene_forward.1} parent=11 // pred_check
        %p409 = pneg %p95
      $region14: #{gene_forward.1} parent=11 // pred_check_branch
        %411 = sbr.rel (%p409) target = $region16
      $region15: #{gene_forward.1} parent=11 // pred_region
        _
      $region16: #{gene_forward.1} parent=11 // pred_fallthru
        _
      // Predicated region
      $region17: #{gene_forward.1} parent=11 // pred_check
        %p412 = pneg %p116
      $region18: #{gene_forward.1} parent=11 // pred_check_branch
        %414 = sbr.rel (%p412) target = $region20
      $region19: #{gene_forward.1} parent=11 // pred_region
        _
      $region20: #{gene_forward.1} parent=11 // pred_fallthru
        _
      // Predicated region
      $region21: #{gene_forward.1} parent=11 // pred_check
        %p415 = pneg %p137
      $region22: #{gene_forward.1} parent=11 // pred_check_branch
        %417 = sbr.rel (%p415) target = $region24
      $region23: #{gene_forward.1} parent=11 // pred_region
        _
      $region24: #{gene_forward.1} parent=11 // pred_fallthru
        _
      // Predicated region
      $region25: #{gene_forward.1} parent=11 // pred_check
        %p418 = pneg %p158
      $region26: #{gene_forward.1} parent=11 // pred_check_branch
        %420 = sbr.rel (%p418) target = $region28
      $region27: #{gene_forward.1} parent=11 // pred_region
        _
      $region28: #{gene_forward.1} parent=11 // pred_fallthru
        _
      // Predicated region
      $region29: #{gene_forward.1} parent=11 // pred_check
        %p421 = pneg %p179
      $region30: #{gene_forward.1} parent=11 // pred_check_branch
        %423 = sbr.rel (%p421) target = $region32
      $region31: #{gene_forward.1} parent=11 // pred_region
        _
      $region32: #{gene_forward.1} parent=11 // pred_fallthru
        _
      // Predicated region
      $region33: #{gene_forward.1} parent=11 // pred_check
        %p424 = pneg %p200
      $region34: #{gene_forward.1} parent=11 // pred_check_branch
        %426 = sbr.rel (%p424) target = $region36
      $region35: #{gene_forward.1} parent=11 // pred_region
        _
      $region36: #{gene_forward.1} parent=11 // pred_fallthru
        _
      // Predicated region
      $region37: #{gene_forward.1} parent=11 // pred_check
        %p427 = pneg %p221
      $region38: #{gene_forward.1} parent=11 // pred_check_branch
        %429 = sbr.rel (%p427) target = $region40
      $region39: #{gene_forward.1} parent=11 // pred_region
        _
      $region40: #{gene_forward.1} parent=11 // pred_fallthru
        _
      // Predicated region
      $region41: #{gene_forward.1} parent=11 // pred_check
        %p430 = pneg %p242
      $region42: #{gene_forward.1} parent=11 // pred_check_branch
        %432 = sbr.rel (%p430) target = $region44
      $region43: #{gene_forward.1} parent=11 // pred_region
        _
      $region44: #{gene_forward.1} parent=11 // pred_fallthru
        _
      // Predicated region
      $region45: #{gene_forward.1} parent=11 // pred_check
        %p433 = pneg %p263
      $region46: #{gene_forward.1} parent=11 // pred_check_branch
        %435 = sbr.rel (%p433) target = $region48
      $region47: #{gene_forward.1} parent=11 // pred_region
        _
      $region48: #{gene_forward.1} parent=11 // pred_fallthru
        _
      // Predicated region
      $region49: #{gene_forward.1} parent=11 // pred_check
        %p436 = pneg %p284
      $region50: #{gene_forward.1} parent=11 // pred_check_branch
        %438 = sbr.rel (%p436) target = $region52
      $region51: #{gene_forward.1} parent=11 // pred_region
        _
      $region52: #{gene_forward.1} parent=11 // pred_fallthru
        _
      // Predicated region
      $region53: #{gene_forward.1} parent=11 // pred_check
        %p439 = pneg %p305
      $region54: #{gene_forward.1} parent=11 // pred_check_branch
        %441 = sbr.rel (%p439) target = $region56
      $region55: #{gene_forward.1} parent=11 // pred_region
        _
      $region56: #{gene_forward.1} parent=11 // pred_fallthru
        _
      // Predicated region
      $region57: #{gene_forward.1} parent=11 // pred_check
        %p442 = pneg %p326
      $region58: #{gene_forward.1} parent=11 // pred_check_branch
        %444 = sbr.rel (%p442) target = $region60
      $region59: #{gene_forward.1} parent=11 // pred_region
        _
      $region60: #{gene_forward.1} parent=11 // pred_fallthru
        _
      // Predicated region
      $region61: #{gene_forward.1} parent=11 // pred_check
        %p445 = pneg %p347
      $region62: #{gene_forward.1} parent=11 // pred_check_branch
        %447 = sbr.rel (%p445) target = $region64
      $region63: #{gene_forward.1} parent=11 // pred_region
        _
      $region64: #{gene_forward.1} parent=11 // pred_fallthru
        _
      // Predicated region
      $region65: #{gene_forward.1} parent=11 // pred_check
        %p448 = pneg %p368
      $region66: #{gene_forward.1} parent=11 // pred_check_branch
        %450 = sbr.rel (%p448) target = $region68
      $region67: #{gene_forward.1} parent=11 // pred_region
        _
      $region68: #{gene_forward.1} parent=11 // pred_fallthru
        _
    $region12: #{gene_forward.1} parent=5 // pred_fallthru
      _
    %p451 = scmp.lt.s32.totalorder %s22, 2
    // Predicated region
    $region69: #{gene_forward.1} parent=5 // pred_check
      %p452 = pneg %p451
    $region70: #{gene_forward.1} parent=5 // pred_check_branch
      %454 = sbr.rel (%p452) target = $region72
    $region71: #{gene_forward.1} parent=5 // pred_region
      // Predicated region
      $region73: #{gene_forward.1} parent=71 // pred_check
        %p455 = pneg %p42
      $region74: #{gene_forward.1} parent=71 // pred_check_branch
        %457 = sbr.rel (%p455) target = $region76
      $region75: #{gene_forward.1} parent=71 // pred_region
        %s458 = smul.u32 16, %s22
        %p459 = scmp.lt.s32.totalorder %s458, 31
        %s460 = scalar_select %p459, %s458, 31
        %s461 = smul.addr %s460, 8
        %s462 = scalar_lea.vmem %s0, %s461
        %s463 = smul.u32 16, %s22
      $region76: #{gene_forward.1} parent=71 // pred_fallthru
        _
      // Predicated region
      $region77: #{gene_forward.1} parent=71 // pred_check
        %p464 = pneg %p68
      $region78: #{gene_forward.1} parent=71 // pred_check_branch
        %466 = sbr.rel (%p464) target = $region80
      $region79: #{gene_forward.1} parent=71 // pred_region
        %s467 = smul.u32 16, %s22
        %p468 = scmp.lt.s32.totalorder %s467, 31
        %s469 = scalar_select %p468, %s467, 31
        %s470 = smul.addr %s469, 8
        %s471 = scalar_lea.vmem %s1, %s470
        %s472 = smul.u32 16, %s22
      $region80: #{gene_forward.1} parent=71 // pred_fallthru
        _
    $region72: #{gene_forward.1} parent=5 // pred_fallthru
      _
    %p473 = scmp.le.s32.totalorder 1, %s22
    %p474 = scmp.lt.s32.totalorder %s22, 3
    %p475 = pnand %p473, %p474
    %p476 = pneg %p475
    // Predicated region
    $region81: #{gene_forward.1} parent=5 // pred_check
      _
    $region82: #{gene_forward.1} parent=5 // pred_check_branch
      %478 = sbr.rel (%p475) target = $region84
    $region83: #{gene_forward.1} parent=5 // pred_region
      %s479 = ssub.s32 %s22, 1
      %s480 = smul.u32 16, %s27
      %p481 = scmp.lt.s32.totalorder %s480, 31
      %s482 = scalar_select %p481, %s480, 31
      %s483 = smul.addr %s482, 8
      %s484 = scalar_lea.vmem %s0, %s483
      %p485 = pneg %p48
      %p486 = pneg %p45
      %s487 = smul.u32 16, %s27
      %p488 = scmp.lt.s32.totalorder %s487, 31
      %s489 = scalar_select %p488, %s487, 31
      %s490 = smul.addr %s489, 8
      %s491 = scalar_lea.vmem %s1, %s490
      %p492 = pneg %p74
      %p493 = pneg %p71
      %p494 = pneg %p95
      %p495 = pneg %p92
      %p496 = pneg %p116
      %p497 = pneg %p113
      %p498 = pneg %p137
      %p499 = pneg %p134
      %p500 = pneg %p158
      %p501 = pneg %p155
      %p502 = pneg %p179
      %p503 = pneg %p176
      %p504 = pneg %p200
      %p505 = pneg %p197
      %p506 = pneg %p221
      %p507 = pneg %p218
      %p508 = pneg %p242
      %p509 = pneg %p239
      %p510 = pneg %p263
      %p511 = pneg %p260
      %p512 = pneg %p284
      %p513 = pneg %p281
      %p514 = pneg %p305
      %p515 = pneg %p302
      %p516 = pneg %p326
      %p517 = pneg %p323
      %p518 = pneg %p347
      %p519 = pneg %p344
      %p520 = pneg %p368
      %p521 = pneg %p365
      %p522 = pneg %p394
      %p523 = pneg %p391
      %s524 = smul.u32 16, %s27
      %p525 = scmp.lt.s32.totalorder %s524, 31
      %s526 = scalar_select %p525, %s524, 31
      %s527 = smul.addr %s526, 8
      %s528 = scalar_lea.vmem %s16, %s527
      %s529 = smul.u32 16, %s27
      %p530 = scmp.lt.s32.totalorder %s529, 31
      %s531 = scalar_select %p530, %s529, 31
      %s532 = smul.addr %s531, 8
      %s533 = scalar_lea.vmem %s0, %s532
      %s534 = smul.u32 16, %s27
      %s535 = smul.u32 16, %s27
      %p536 = scmp.lt.s32.totalorder %s535, 31
      %s537 = scalar_select %p536, %s535, 31
      %s538 = smul.addr %s537, 8
      %s539 = scalar_lea.vmem %s1, %s538
      %s540 = smul.u32 16, %s27
      %s541 = smul.u32 16, %s27
      %p542 = scmp.lt.s32.totalorder %s541, 31
      %s543 = scalar_select %p542, %s541, 31
      %s544 = smul.addr %s543, 8
      %s545 = scalar_lea.vmem %s16, %s544
      %s546 = smul.u32 16, %s27
      %v547 = vld [vmem:[%s533] sm:$0xff]
      %v548 = vld [vmem:[%s533 + $0x8] sm:$0xff]
      %v549 = vld [vmem:[%s533 + $0x10] sm:$0xff]
      %v550 = vld [vmem:[%s533 + $0x18] sm:$0xff]
      %v551 = vld [vmem:[%s533 + $0x20] sm:$0xff]
      %v552 = vld [vmem:[%s533 + $0x28] sm:$0xff]
      %v553 = vld [vmem:[%s533 + $0x30] sm:$0xff]
      %v554 = vld [vmem:[%s533 + $0x38] sm:$0xff]
      %v555 = vld [vmem:[%s533 + $0x40] sm:$0xff]
      %v556 = vld [vmem:[%s533 + $0x48] sm:$0xff]
      %v557 = vld [vmem:[%s533 + $0x50] sm:$0xff]
      %v558 = vld [vmem:[%s533 + $0x58] sm:$0xff]
      %v559 = vld [vmem:[%s533 + $0x60] sm:$0xff]
      %v560 = vld [vmem:[%s533 + $0x68] sm:$0xff]
      %v561 = vld [vmem:[%s533 + $0x70] sm:$0xff]
      %v562 = vld [vmem:[%s533 + $0x78] sm:$0xff]
      %v563 = vlaneseq
      %v564 = vand.u32 %v563, 127
      %565 = vset.pattern.permute.xlu0 0
      %566 = vperm.xlu0 %565, %v547
      %v567 = vpop.permute.xlu0 %566
      %568 = vset.pattern.permute.xlu0 0
      %569 = vperm.xlu0 %568, %v548
      %v570 = vpop.permute.xlu0 %569
      %571 = vset.pattern.permute.xlu0 0
      %572 = vperm.xlu0 %571, %v549
      %v573 = vpop.permute.xlu0 %572
      %574 = vset.pattern.permute.xlu0 0
      %575 = vperm.xlu0 %574, %v550
      %v576 = vpop.permute.xlu0 %575
      %577 = vset.pattern.permute.xlu0 0
      %578 = vperm.xlu0 %577, %v551
      %v579 = vpop.permute.xlu0 %578
      %580 = vset.pattern.permute.xlu0 0
      %581 = vperm.xlu0 %580, %v552
      %v582 = vpop.permute.xlu0 %581
      %583 = vset.pattern.permute.xlu0 0
      %584 = vperm.xlu0 %583, %v553
      %v585 = vpop.permute.xlu0 %584
      %586 = vset.pattern.permute.xlu0 0
      %587 = vperm.xlu0 %586, %v554
      %v588 = vpop.permute.xlu0 %587
      %589 = vset.pattern.permute.xlu0 0
      %590 = vperm.xlu0 %589, %v555
      %v591 = vpop.permute.xlu0 %590
      %592 = vset.pattern.permute.xlu0 0
      %593 = vperm.xlu0 %592, %v556
      %v594 = vpop.permute.xlu0 %593
      %595 = vset.pattern.permute.xlu0 0
      %596 = vperm.xlu0 %595, %v557
      %v597 = vpop.permute.xlu0 %596
      %598 = vset.pattern.permute.xlu0 0
      %599 = vperm.xlu0 %598, %v558
      %v600 = vpop.permute.xlu0 %599
      %601 = vset.pattern.permute.xlu0 0
      %602 = vperm.xlu0 %601, %v559
      %v603 = vpop.permute.xlu0 %602
      %604 = vset.pattern.permute.xlu0 0
      %605 = vperm.xlu0 %604, %v560
      %v606 = vpop.permute.xlu0 %605
      %607 = vset.pattern.permute.xlu0 0
      %608 = vperm.xlu0 %607, %v561
      %v609 = vpop.permute.xlu0 %608
      %610 = vset.pattern.permute.xlu0 0
      %611 = vperm.xlu0 %610, %v562
      %v612 = vpop.permute.xlu0 %611
      %vm613 = vcmp.eq.s32.totalorder %v567, %v564
      %vm614 = vcmp.eq.s32.totalorder %v570, %v564
      %vm615 = vcmp.eq.s32.totalorder %v573, %v564
      %vm616 = vcmp.eq.s32.totalorder %v576, %v564
      %vm617 = vcmp.eq.s32.totalorder %v579, %v564
      %vm618 = vcmp.eq.s32.totalorder %v582, %v564
      %vm619 = vcmp.eq.s32.totalorder %v585, %v564
      %vm620 = vcmp.eq.s32.totalorder %v588, %v564
      %vm621 = vcmp.eq.s32.totalorder %v591, %v564
      %vm622 = vcmp.eq.s32.totalorder %v594, %v564
      %vm623 = vcmp.eq.s32.totalorder %v597, %v564
      %vm624 = vcmp.eq.s32.totalorder %v600, %v564
      %vm625 = vcmp.eq.s32.totalorder %v603, %v564
      %vm626 = vcmp.eq.s32.totalorder %v606, %v564
      %vm627 = vcmp.eq.s32.totalorder %v609, %v564
      %vm628 = vcmp.eq.s32.totalorder %v612, %v564
      %v629 = vsel %vm613, 1, 0
      %v630 = vsel %vm614, 1, 0
      %v631 = vsel %vm615, 1, 0
      %v632 = vsel %vm616, 1, 0
      %v633 = vsel %vm617, 1, 0
      %v634 = vsel %vm618, 1, 0
      %v635 = vsel %vm619, 1, 0
      %v636 = vsel %vm620, 1, 0
      %v637 = vsel %vm621, 1, 0
      %v638 = vsel %vm622, 1, 0
      %v639 = vsel %vm623, 1, 0
      %v640 = vsel %vm624, 1, 0
      %v641 = vsel %vm625, 1, 0
      %v642 = vsel %vm626, 1, 0
      %v643 = vsel %vm627, 1, 0
      %v644 = vsel %vm628, 1, 0
      %v645 = vcvt.s32.f32 %v629
      %v646 = vcvt.s32.f32 %v630
      %v647 = vcvt.s32.f32 %v631
      %v648 = vcvt.s32.f32 %v632
      %v649 = vcvt.s32.f32 %v633
      %v650 = vcvt.s32.f32 %v634
      %v651 = vcvt.s32.f32 %v635
      %v652 = vcvt.s32.f32 %v636
      %v653 = vcvt.s32.f32 %v637
      %v654 = vcvt.s32.f32 %v638
      %v655 = vcvt.s32.f32 %v639
      %v656 = vcvt.s32.f32 %v640
      %v657 = vcvt.s32.f32 %v641
      %v658 = vcvt.s32.f32 %v642
      %v659 = vcvt.s32.f32 %v643
      %v660 = vcvt.s32.f32 %v644
      %v661 = vadd.f32 %v645, 0.0
      %v662 = vadd.f32 %v646, 0.0
      %v663 = vadd.f32 %v647, 0.0
      %v664 = vadd.f32 %v648, 0.0
      %v665 = vadd.f32 %v649, 0.0
      %v666 = vadd.f32 %v650, 0.0
      %v667 = vadd.f32 %v651, 0.0
      %v668 = vadd.f32 %v652, 0.0
      %v669 = vadd.f32 %v653, 0.0
      %v670 = vadd.f32 %v654, 0.0
      %v671 = vadd.f32 %v655, 0.0
      %v672 = vadd.f32 %v656, 0.0
      %v673 = vadd.f32 %v657, 0.0
      %v674 = vadd.f32 %v658, 0.0
      %v675 = vadd.f32 %v659, 0.0
      %v676 = vadd.f32 %v660, 0.0
      %677 = vset.pattern.permute.xlu0 1
      %678 = vperm.xlu0 %677, %v547
      %v679 = vpop.permute.xlu0 %678
      %680 = vset.pattern.permute.xlu0 1
      %681 = vperm.xlu0 %680, %v548
      %v682 = vpop.permute.xlu0 %681
      %683 = vset.pattern.permute.xlu0 1
      %684 = vperm.xlu0 %683, %v549
      %v685 = vpop.permute.xlu0 %684
      %686 = vset.pattern.permute.xlu0 1
      %687 = vperm.xlu0 %686, %v550
      %v688 = vpop.permute.xlu0 %687
      %689 = vset.pattern.permute.xlu0 1
      %690 = vperm.xlu0 %689, %v551
      %v691 = vpop.permute.xlu0 %690
      %692 = vset.pattern.permute.xlu0 1
      %693 = vperm.xlu0 %692, %v552
      %v694 = vpop.permute.xlu0 %693
      %695 = vset.pattern.permute.xlu0 1
      %696 = vperm.xlu0 %695, %v553
      %v697 = vpop.permute.xlu0 %696
      %698 = vset.pattern.permute.xlu0 1
      %699 = vperm.xlu0 %698, %v554
      %v700 = vpop.permute.xlu0 %699
      %701 = vset.pattern.permute.xlu0 1
      %702 = vperm.xlu0 %701, %v555
      %v703 = vpop.permute.xlu0 %702
      %704 = vset.pattern.permute.xlu0 1
      %705 = vperm.xlu0 %704, %v556
      %v706 = vpop.permute.xlu0 %705
      %707 = vset.pattern.permute.xlu0 1
      %708 = vperm.xlu0 %707, %v557
      %v709 = vpop.permute.xlu0 %708
      %710 = vset.pattern.permute.xlu0 1
      %711 = vperm.xlu0 %710, %v558
      %v712 = vpop.permute.xlu0 %711
      %713 = vset.pattern.permute.xlu0 1
      %714 = vperm.xlu0 %713, %v559
      %v715 = vpop.permute.xlu0 %714
      %716 = vset.pattern.permute.xlu0 1
      %717 = vperm.xlu0 %716, %v560
      %v718 = vpop.permute.xlu0 %717
      %719 = vset.pattern.permute.xlu0 1
      %720 = vperm.xlu0 %719, %v561
      %v721 = vpop.permute.xlu0 %720
      %722 = vset.pattern.permute.xlu0 1
      %723 = vperm.xlu0 %722, %v562
      %v724 = vpop.permute.xlu0 %723
      %vm725 = vcmp.eq.s32.totalorder %v679, %v564
      %vm726 = vcmp.eq.s32.totalorder %v682, %v564
      %vm727 = vcmp.eq.s32.totalorder %v685, %v564
      %vm728 = vcmp.eq.s32.totalorder %v688, %v564
      %vm729 = vcmp.eq.s32.totalorder %v691, %v564
      %vm730 = vcmp.eq.s32.totalorder %v694, %v564
      %vm731 = vcmp.eq.s32.totalorder %v697, %v564
      %vm732 = vcmp.eq.s32.totalorder %v700, %v564
      %vm733 = vcmp.eq.s32.totalorder %v703, %v564
      %vm734 = vcmp.eq.s32.totalorder %v706, %v564
      %vm735 = vcmp.eq.s32.totalorder %v709, %v564
      %vm736 = vcmp.eq.s32.totalorder %v712, %v564
      %vm737 = vcmp.eq.s32.totalorder %v715, %v564
      %vm738 = vcmp.eq.s32.totalorder %v718, %v564
      %vm739 = vcmp.eq.s32.totalorder %v721, %v564
      %vm740 = vcmp.eq.s32.totalorder %v724, %v564
      %v741 = vsel %vm725, 1, 0
      %v742 = vsel %vm726, 1, 0
      %v743 = vsel %vm727, 1, 0
      %v744 = vsel %vm728, 1, 0
      %v745 = vsel %vm729, 1, 0
      %v746 = vsel %vm730, 1, 0
      %v747 = vsel %vm731, 1, 0
      %v748 = vsel %vm732, 1, 0
      %v749 = vsel %vm733, 1, 0
      %v750 = vsel %vm734, 1, 0
      %v751 = vsel %vm735, 1, 0
      %v752 = vsel %vm736, 1, 0
      %v753 = vsel %vm737, 1, 0
      %v754 = vsel %vm738, 1, 0
      %v755 = vsel %vm739, 1, 0
      %v756 = vsel %vm740, 1, 0
      %v757 = vcvt.s32.f32 %v741
      %v758 = vcvt.s32.f32 %v742
      %v759 = vcvt.s32.f32 %v743
      %v760 = vcvt.s32.f32 %v744
      %v761 = vcvt.s32.f32 %v745
      %v762 = vcvt.s32.f32 %v746
      %v763 = vcvt.s32.f32 %v747
      %v764 = vcvt.s32.f32 %v748
      %v765 = vcvt.s32.f32 %v749
      %v766 = vcvt.s32.f32 %v750
      %v767 = vcvt.s32.f32 %v751
      %v768 = vcvt.s32.f32 %v752
      %v769 = vcvt.s32.f32 %v753
      %v770 = vcvt.s32.f32 %v754
      %v771 = vcvt.s32.f32 %v755
      %v772 = vcvt.s32.f32 %v756
      %v773 = vadd.f32 %v661, %v757
      %v774 = vadd.f32 %v662, %v758
      %v775 = vadd.f32 %v663, %v759
      %v776 = vadd.f32 %v664, %v760
      %v777 = vadd.f32 %v665, %v761
      %v778 = vadd.f32 %v666, %v762
      %v779 = vadd.f32 %v667, %v763
      %v780 = vadd.f32 %v668, %v764
      %v781 = vadd.f32 %v669, %v765
      %v782 = vadd.f32 %v670, %v766
      %v783 = vadd.f32 %v671, %v767
      %v784 = vadd.f32 %v672, %v768
      %v785 = vadd.f32 %v673, %v769
      %v786 = vadd.f32 %v674, %v770
      %v787 = vadd.f32 %v675, %v771
      %v788 = vadd.f32 %v676, %v772
      %789 = vset.pattern.permute.xlu0 2
      %790 = vperm.xlu0 %789, %v547
      %v791 = vpop.permute.xlu0 %790
      %792 = vset.pattern.permute.xlu0 2
      %793 = vperm.xlu0 %792, %v548
      %v794 = vpop.permute.xlu0 %793
      %795 = vset.pattern.permute.xlu0 2
      %796 = vperm.xlu0 %795, %v549
      %v797 = vpop.permute.xlu0 %796
      %798 = vset.pattern.permute.xlu0 2
      %799 = vperm.xlu0 %798, %v550
      %v800 = vpop.permute.xlu0 %799
      %801 = vset.pattern.permute.xlu0 2
      %802 = vperm.xlu0 %801, %v551
      %v803 = vpop.permute.xlu0 %802
      %804 = vset.pattern.permute.xlu0 2
      %805 = vperm.xlu0 %804, %v552
      %v806 = vpop.permute.xlu0 %805
      %807 = vset.pattern.permute.xlu0 2
      %808 = vperm.xlu0 %807, %v553
      %v809 = vpop.permute.xlu0 %808
      %810 = vset.pattern.permute.xlu0 2
      %811 = vperm.xlu0 %810, %v554
      %v812 = vpop.permute.xlu0 %811
      %813 = vset.pattern.permute.xlu0 2
      %814 = vperm.xlu0 %813, %v555
      %v815 = vpop.permute.xlu0 %814
      %816 = vset.pattern.permute.xlu0 2
      %817 = vperm.xlu0 %816, %v556
      %v818 = vpop.permute.xlu0 %817
      %819 = vset.pattern.permute.xlu0 2
      %820 = vperm.xlu0 %819, %v557
      %v821 = vpop.permute.xlu0 %820
      %822 = vset.pattern.permute.xlu0 2
      %823 = vperm.xlu0 %822, %v558
      %v824 = vpop.permute.xlu0 %823
      %825 = vset.pattern.permute.xlu0 2
      %826 = vperm.xlu0 %825, %v559
      %v827 = vpop.permute.xlu0 %826
      %828 = vset.pattern.permute.xlu0 2
      %829 = vperm.xlu0 %828, %v560
      %v830 = vpop.permute.xlu0 %829
      %831 = vset.pattern.permute.xlu0 2
      %832 = vperm.xlu0 %831, %v561
      %v833 = vpop.permute.xlu0 %832
      %834 = vset.pattern.permute.xlu0 2
      %835 = vperm.xlu0 %834, %v562
      %v836 = vpop.permute.xlu0 %835
      %vm837 = vcmp.eq.s32.totalorder %v791, %v564
      %vm838 = vcmp.eq.s32.totalorder %v794, %v564
      %vm839 = vcmp.eq.s32.totalorder %v797, %v564
      %vm840 = vcmp.eq.s32.totalorder %v800, %v564
      %vm841 = vcmp.eq.s32.totalorder %v803, %v564
      %vm842 = vcmp.eq.s32.totalorder %v806, %v564
      %vm843 = vcmp.eq.s32.totalorder %v809, %v564
      %vm844 = vcmp.eq.s32.totalorder %v812, %v564
      %vm845 = vcmp.eq.s32.totalorder %v815, %v564
      %vm846 = vcmp.eq.s32.totalorder %v818, %v564
      %vm847 = vcmp.eq.s32.totalorder %v821, %v564
      %vm848 = vcmp.eq.s32.totalorder %v824, %v564
      %vm849 = vcmp.eq.s32.totalorder %v827, %v564
      %vm850 = vcmp.eq.s32.totalorder %v830, %v564
      %vm851 = vcmp.eq.s32.totalorder %v833, %v564
      %vm852 = vcmp.eq.s32.totalorder %v836, %v564
      %v853 = vsel %vm837, 1, 0
      %v854 = vsel %vm838, 1, 0
      %v855 = vsel %vm839, 1, 0
      %v856 = vsel %vm840, 1, 0
      %v857 = vsel %vm841, 1, 0
      %v858 = vsel %vm842, 1, 0
      %v859 = vsel %vm843, 1, 0
      %v860 = vsel %vm844, 1, 0
      %v861 = vsel %vm845, 1, 0
      %v862 = vsel %vm846, 1, 0
      %v863 = vsel %vm847, 1, 0
      %v864 = vsel %vm848, 1, 0
      %v865 = vsel %vm849, 1, 0
      %v866 = vsel %vm850, 1, 0
      %v867 = vsel %vm851, 1, 0
      %v868 = vsel %vm852, 1, 0
      %v869 = vcvt.s32.f32 %v853
      %v870 = vcvt.s32.f32 %v854
      %v871 = vcvt.s32.f32 %v855
      %v872 = vcvt.s32.f32 %v856
      %v873 = vcvt.s32.f32 %v857
      %v874 = vcvt.s32.f32 %v858
      %v875 = vcvt.s32.f32 %v859
      %v876 = vcvt.s32.f32 %v860
      %v877 = vcvt.s32.f32 %v861
      %v878 = vcvt.s32.f32 %v862
      %v879 = vcvt.s32.f32 %v863
      %v880 = vcvt.s32.f32 %v864
      %v881 = vcvt.s32.f32 %v865
      %v882 = vcvt.s32.f32 %v866
      %v883 = vcvt.s32.f32 %v867
      %v884 = vcvt.s32.f32 %v868
      %v885 = vadd.f32 %v773, %v869
      %v886 = vadd.f32 %v774, %v870
      %v887 = vadd.f32 %v775, %v871
      %v888 = vadd.f32 %v776, %v872
      %v889 = vadd.f32 %v777, %v873
      %v890 = vadd.f32 %v778, %v874
      %v891 = vadd.f32 %v779, %v875
      %v892 = vadd.f32 %v780, %v876
      %v893 = vadd.f32 %v781, %v877
      %v894 = vadd.f32 %v782, %v878
      %v895 = vadd.f32 %v783, %v879
      %v896 = vadd.f32 %v784, %v880
      %v897 = vadd.f32 %v785, %v881
      %v898 = vadd.f32 %v786, %v882
      %v899 = vadd.f32 %v787, %v883
      %v900 = vadd.f32 %v788, %v884
      %v901 = vld [vmem:[%s2] sm:$0xff]
      %v902 = vld [vmem:[%s2 + $0x8] sm:$0xff]
      %vm903 = vcmask 130048
      %v905 = vsel %vm903, %v885, 0
      %v908 = vsel %vm903, %v886, 0
      %v911 = vsel %vm903, %v887, 0
      %v914 = vsel %vm903, %v888, 0
      %v917 = vsel %vm903, %v889, 0
      %v920 = vsel %vm903, %v890, 0
      %v923 = vsel %vm903, %v891, 0
      %v926 = vsel %vm903, %v892, 0
      %v929 = vsel %vm903, %v893, 0
      %v932 = vsel %vm903, %v894, 0
      %v935 = vsel %vm903, %v895, 0
      %v938 = vsel %vm903, %v896, 0
      %v941 = vsel %vm903, %v897, 0
      %v944 = vsel %vm903, %v898, 0
      %v947 = vsel %vm903, %v899, 0
      %v950 = vsel %vm903, %v900, 0
      %952 = vmatpush.msra.mxu0 0.0
      %953 = vmatpush.msra.mxu0 0.0
      %954 = vmatpush.msra.mxu0 0.0
      %955 = vmatpush.msra.mxu0 0.0
      %956 = vmatpush.msra.mxu0 0.0
      %957 = vmatpush.msra.mxu0 0.0
      %958 = vmatpush.msra.mxu0 0.0
      %959 = vmatpush.msra.mxu0 0.0
      %960 = vmatpush.msra.mxu0 0.0
      %961 = vmatpush.msra.mxu0 0.0
      %962 = vmatpush.msra.mxu0 0.0
      %963 = vmatpush.msra.mxu0 0.0
      %964 = vmatpush.msra.mxu0 0.0
      %965 = vmatpush.msra.mxu0 0.0
      %966 = vmatpush.msra.mxu0 %v902
      %967 = vmatpush.msra.mxu0 %v901
      %968 = vmatmul.f32.gmra.mxu0 %v905
      %v969 = vpop.f32.mrf.mxu0
      %v970 = vadd.f32 0.0, %v969
      %971 = vmatmul.f32.gmra.mxu0 %v908
      %v972 = vpop.f32.mrf.mxu0
      %v973 = vadd.f32 0.0, %v972
      %974 = vmatmul.f32.gmra.mxu0 %v911
      %v975 = vpop.f32.mrf.mxu0
      %v976 = vadd.f32 0.0, %v975
      %977 = vmatmul.f32.gmra.mxu0 %v914
      %v978 = vpop.f32.mrf.mxu0
      %v979 = vadd.f32 0.0, %v978
      %980 = vmatmul.f32.gmra.mxu0 %v917
      %v981 = vpop.f32.mrf.mxu0
      %v982 = vadd.f32 0.0, %v981
      %983 = vmatmul.f32.gmra.mxu0 %v920
      %v984 = vpop.f32.mrf.mxu0
      %v985 = vadd.f32 0.0, %v984
      %986 = vmatmul.f32.gmra.mxu0 %v923
      %v987 = vpop.f32.mrf.mxu0
      %v988 = vadd.f32 0.0, %v987
      %989 = vmatmul.f32.gmra.mxu0 %v926
      %v990 = vpop.f32.mrf.mxu0
      %v991 = vadd.f32 0.0, %v990
      %992 = vmatmul.f32.gmra.mxu0 %v929
      %v993 = vpop.f32.mrf.mxu0
      %v994 = vadd.f32 0.0, %v993
      %995 = vmatmul.f32.gmra.mxu0 %v932
      %v996 = vpop.f32.mrf.mxu0
      %v997 = vadd.f32 0.0, %v996
      %998 = vmatmul.f32.gmra.mxu0 %v935
      %v999 = vpop.f32.mrf.mxu0
      %v1000 = vadd.f32 0.0, %v999
      %1001 = vmatmul.f32.gmra.mxu0 %v938
      %v1002 = vpop.f32.mrf.mxu0
      %v1003 = vadd.f32 0.0, %v1002
      %1004 = vmatmul.f32.gmra.mxu0 %v941
      %v1005 = vpop.f32.mrf.mxu0
      %v1006 = vadd.f32 0.0, %v1005
      %1007 = vmatmul.f32.gmra.mxu0 %v944
      %v1008 = vpop.f32.mrf.mxu0
      %v1009 = vadd.f32 0.0, %v1008
      %1010 = vmatmul.f32.gmra.mxu0 %v947
      %v1011 = vpop.f32.mrf.mxu0
      %v1012 = vadd.f32 0.0, %v1011
      %1013 = vmatmul.f32.gmra.mxu0 %v950
      %v1014 = vpop.f32.mrf.mxu0
      %v1015 = vadd.f32 0.0, %v1014
      %1016 = vdwg.mxu0
      %v1017 = vld [vmem:[%s3] sm:$0xff]
      %v1018 = vld [vmem:[%s3 + $0x8] sm:$0x1]
      %v1019 = vld [vmem:[%s539] sm:$0xff]
      %v1020 = vld [vmem:[%s539 + $0x8] sm:$0xff]
      %v1021 = vld [vmem:[%s539 + $0x10] sm:$0xff]
      %v1022 = vld [vmem:[%s539 + $0x18] sm:$0xff]
      %v1023 = vld [vmem:[%s539 + $0x20] sm:$0xff]
      %v1024 = vld [vmem:[%s539 + $0x28] sm:$0xff]
      %v1025 = vld [vmem:[%s539 + $0x30] sm:$0xff]
      %v1026 = vld [vmem:[%s539 + $0x38] sm:$0xff]
      %v1027 = vld [vmem:[%s539 + $0x40] sm:$0xff]
      %v1028 = vld [vmem:[%s539 + $0x48] sm:$0xff]
      %v1029 = vld [vmem:[%s539 + $0x50] sm:$0xff]
      %v1030 = vld [vmem:[%s539 + $0x58] sm:$0xff]
      %v1031 = vld [vmem:[%s539 + $0x60] sm:$0xff]
      %v1032 = vld [vmem:[%s539 + $0x68] sm:$0xff]
      %v1033 = vld [vmem:[%s539 + $0x70] sm:$0xff]
      %v1034 = vld [vmem:[%s539 + $0x78] sm:$0xff]
      %v1035 = vld [vmem:[%s4] sm:$0x7f]
      %vm1036 = vcmask 56320
      %v1038 = vsel %vm1036, %v1019, 0
      %v1041 = vsel %vm1036, %v1020, 0
      %v1044 = vsel %vm1036, %v1021, 0
      %v1047 = vsel %vm1036, %v1022, 0
      %v1050 = vsel %vm1036, %v1023, 0
      %v1053 = vsel %vm1036, %v1024, 0
      %v1056 = vsel %vm1036, %v1025, 0
      %v1059 = vsel %vm1036, %v1026, 0
      %v1062 = vsel %vm1036, %v1027, 0
      %v1065 = vsel %vm1036, %v1028, 0
      %v1068 = vsel %vm1036, %v1029, 0
      %v1071 = vsel %vm1036, %v1030, 0
      %v1074 = vsel %vm1036, %v1031, 0
      %v1077 = vsel %vm1036, %v1032, 0
      %v1080 = vsel %vm1036, %v1033, 0
      %v1083 = vsel %vm1036, %v1034, 0
      %vm1085 = vcmask 1046528
      %v1087 = vsel %vm1085, %v1035, 0
      %1089 = vmatpush.msra.mxu0 0.0
      %1090 = vmatpush.msra.mxu0 0.0
      %1091 = vmatpush.msra.mxu0 0.0
      %1092 = vmatpush.msra.mxu0 0.0
      %1093 = vmatpush.msra.mxu0 0.0
      %1094 = vmatpush.msra.mxu0 0.0
      %1095 = vmatpush.msra.mxu0 0.0
      %1096 = vmatpush.msra.mxu0 0.0
      %1097 = vmatpush.msra.mxu0 0.0
      %1098 = vmatpush.msra.mxu0 0.0
      %1099 = vmatpush.msra.mxu0 0.0
      %1100 = vmatpush.msra.mxu0 0.0
      %1101 = vmatpush.msra.mxu0 0.0
      %1102 = vmatpush.msra.mxu0 0.0
      %1103 = vmatpush.msra.mxu0 0.0
      %1104 = vmatpush.msra.mxu0 %v1087
      %1105 = vmatmul.f32.gmra.mxu0 %v1038
      %v1106 = vpop.f32.mrf.mxu0
      %v1107 = vadd.f32 0.0, %v1106
      %1108 = vmatmul.f32.gmra.mxu0 %v1041
      %v1109 = vpop.f32.mrf.mxu0
      %v1110 = vadd.f32 0.0, %v1109
      %1111 = vmatmul.f32.gmra.mxu0 %v1044
      %v1112 = vpop.f32.mrf.mxu0
      %v1113 = vadd.f32 0.0, %v1112
      %1114 = vmatmul.f32.gmra.mxu0 %v1047
      %v1115 = vpop.f32.mrf.mxu0
      %v1116 = vadd.f32 0.0, %v1115
      %1117 = vmatmul.f32.gmra.mxu0 %v1050
      %v1118 = vpop.f32.mrf.mxu0
      %v1119 = vadd.f32 0.0, %v1118
      %1120 = vmatmul.f32.gmra.mxu0 %v1053
      %v1121 = vpop.f32.mrf.mxu0
      %v1122 = vadd.f32 0.0, %v1121
      %1123 = vmatmul.f32.gmra.mxu0 %v1056
      %v1124 = vpop.f32.mrf.mxu0
      %v1125 = vadd.f32 0.0, %v1124
      %1126 = vmatmul.f32.gmra.mxu0 %v1059
      %v1127 = vpop.f32.mrf.mxu0
      %v1128 = vadd.f32 0.0, %v1127
      %1129 = vmatmul.f32.gmra.mxu0 %v1062
      %v1130 = vpop.f32.mrf.mxu0
      %v1131 = vadd.f32 0.0, %v1130
      %1132 = vmatmul.f32.gmra.mxu0 %v1065
      %v1133 = vpop.f32.mrf.mxu0
      %v1134 = vadd.f32 0.0, %v1133
      %1135 = vmatmul.f32.gmra.mxu0 %v1068
      %v1136 = vpop.f32.mrf.mxu0
      %v1137 = vadd.f32 0.0, %v1136
      %1138 = vmatmul.f32.gmra.mxu0 %v1071
      %v1139 = vpop.f32.mrf.mxu0
      %v1140 = vadd.f32 0.0, %v1139
      %1141 = vmatmul.f32.gmra.mxu0 %v1074
      %v1142 = vpop.f32.mrf.mxu0
      %v1143 = vadd.f32 0.0, %v1142
      %1144 = vmatmul.f32.gmra.mxu0 %v1077
      %v1145 = vpop.f32.mrf.mxu0
      %v1146 = vadd.f32 0.0, %v1145
      %1147 = vmatmul.f32.gmra.mxu0 %v1080
      %v1148 = vpop.f32.mrf.mxu0
      %v1149 = vadd.f32 0.0, %v1148
      %1150 = vmatmul.f32.gmra.mxu0 %v1083
      %v1151 = vpop.f32.mrf.mxu0
      %v1152 = vadd.f32 0.0, %v1151
      %1153 = vdwg.mxu0
      %vm1154 = vcmask 72704
      %v1156 = vsel %vm1154, %v970, 0
      %v1159 = vsel %vm1154, %v973, 0
      %v1162 = vsel %vm1154, %v976, 0
      %v1165 = vsel %vm1154, %v979, 0
      %v1168 = vsel %vm1154, %v982, 0
      %v1171 = vsel %vm1154, %v985, 0
      %v1174 = vsel %vm1154, %v988, 0
      %v1177 = vsel %vm1154, %v991, 0
      %v1180 = vsel %vm1154, %v994, 0
      %v1183 = vsel %vm1154, %v997, 0
      %v1186 = vsel %vm1154, %v1000, 0
      %v1189 = vsel %vm1154, %v1003, 0
      %v1192 = vsel %vm1154, %v1006, 0
      %v1195 = vsel %vm1154, %v1009, 0
      %v1198 = vsel %vm1154, %v1012, 0
      %v1201 = vsel %vm1154, %v1015, 0
      %vm1203 = vcmask 1040384
      %v1205 = vsel %vm1203, %v1018, 0
      %1207 = vmatpush.msra.mxu0 0.0
      %1208 = vmatpush.msra.mxu0 0.0
      %1209 = vmatpush.msra.mxu0 0.0
      %1210 = vmatpush.msra.mxu0 0.0
      %1211 = vmatpush.msra.mxu0 0.0
      %1212 = vmatpush.msra.mxu0 0.0
      %1213 = vmatpush.msra.mxu0 0.0
      %1214 = vmatpush.msra.mxu0 0.0
      %1215 = vmatpush.msra.mxu0 0.0
      %1216 = vmatpush.msra.mxu0 0.0
      %1217 = vmatpush.msra.mxu0 0.0
      %1218 = vmatpush.msra.mxu0 0.0
      %1219 = vmatpush.msra.mxu0 0.0
      %1220 = vmatpush.msra.mxu0 0.0
      %1221 = vmatpush.msra.mxu0 %v1205
      %1222 = vmatpush.msra.mxu0 %v1017
      %1223 = vmatmul.f32.gmra.mxu0 %v1156
      %v1224 = vpop.f32.mrf.mxu0
      %v1225 = vadd.f32 %v1107, %v1224
      %1226 = vmatmul.f32.gmra.mxu0 %v1159
      %v1227 = vpop.f32.mrf.mxu0
      %v1228 = vadd.f32 %v1110, %v1227
      %1229 = vmatmul.f32.gmra.mxu0 %v1162
      %v1230 = vpop.f32.mrf.mxu0
      %v1231 = vadd.f32 %v1113, %v1230
      %1232 = vmatmul.f32.gmra.mxu0 %v1165
      %v1233 = vpop.f32.mrf.mxu0
      %v1234 = vadd.f32 %v1116, %v1233
      %1235 = vmatmul.f32.gmra.mxu0 %v1168
      %v1236 = vpop.f32.mrf.mxu0
      %v1237 = vadd.f32 %v1119, %v1236
      %1238 = vmatmul.f32.gmra.mxu0 %v1171
      %v1239 = vpop.f32.mrf.mxu0
      %v1240 = vadd.f32 %v1122, %v1239
      %1241 = vmatmul.f32.gmra.mxu0 %v1174
      %v1242 = vpop.f32.mrf.mxu0
      %v1243 = vadd.f32 %v1125, %v1242
      %1244 = vmatmul.f32.gmra.mxu0 %v1177
      %v1245 = vpop.f32.mrf.mxu0
      %v1246 = vadd.f32 %v1128, %v1245
      %1247 = vmatmul.f32.gmra.mxu0 %v1180
      %v1248 = vpop.f32.mrf.mxu0
      %v1249 = vadd.f32 %v1131, %v1248
      %1250 = vmatmul.f32.gmra.mxu0 %v1183
      %v1251 = vpop.f32.mrf.mxu0
      %v1252 = vadd.f32 %v1134, %v1251
      %1253 = vmatmul.f32.gmra.mxu0 %v1186
      %v1254 = vpop.f32.mrf.mxu0
      %v1255 = vadd.f32 %v1137, %v1254
      %1256 = vmatmul.f32.gmra.mxu0 %v1189
      %v1257 = vpop.f32.mrf.mxu0
      %v1258 = vadd.f32 %v1140, %v1257
      %1259 = vmatmul.f32.gmra.mxu0 %v1192
      %v1260 = vpop.f32.mrf.mxu0
      %v1261 = vadd.f32 %v1143, %v1260
      %1262 = vmatmul.f32.gmra.mxu0 %v1195
      %v1263 = vpop.f32.mrf.mxu0
      %v1264 = vadd.f32 %v1146, %v1263
      %1265 = vmatmul.f32.gmra.mxu0 %v1198
      %v1266 = vpop.f32.mrf.mxu0
      %v1267 = vadd.f32 %v1149, %v1266
      %1268 = vmatmul.f32.gmra.mxu0 %v1201
      %v1269 = vpop.f32.mrf.mxu0
      %v1270 = vadd.f32 %v1152, %v1269
      %1271 = vdwg.mxu0
      %v1272 = vld [vmem:[%s5] sm:$0x1]
      %v1274 = vperm.slane %v1272, 0
      %v1276 = vadd.f32 %v1225, %v1274
      %v1277 = vadd.f32 %v1228, %v1274
      %v1278 = vadd.f32 %v1231, %v1274
      %v1279 = vadd.f32 %v1234, %v1274
      %v1280 = vadd.f32 %v1237, %v1274
      %v1281 = vadd.f32 %v1240, %v1274
      %v1282 = vadd.f32 %v1243, %v1274
      %v1283 = vadd.f32 %v1246, %v1274
      %v1284 = vadd.f32 %v1249, %v1274
      %v1285 = vadd.f32 %v1252, %v1274
      %v1286 = vadd.f32 %v1255, %v1274
      %v1287 = vadd.f32 %v1258, %v1274
      %v1288 = vadd.f32 %v1261, %v1274
      %v1289 = vadd.f32 %v1264, %v1274
      %v1290 = vadd.f32 %v1267, %v1274
      %v1291 = vadd.f32 %v1270, %v1274
      %v1292 = vmax.f32 %v1276, 0.0
      %v1293 = vmax.f32 %v1277, 0.0
      %v1294 = vmax.f32 %v1278, 0.0
      %v1295 = vmax.f32 %v1279, 0.0
      %v1296 = vmax.f32 %v1280, 0.0
      %v1297 = vmax.f32 %v1281, 0.0
      %v1298 = vmax.f32 %v1282, 0.0
      %v1299 = vmax.f32 %v1283, 0.0
      %v1300 = vmax.f32 %v1284, 0.0
      %v1301 = vmax.f32 %v1285, 0.0
      %v1302 = vmax.f32 %v1286, 0.0
      %v1303 = vmax.f32 %v1287, 0.0
      %v1304 = vmax.f32 %v1288, 0.0
      %v1305 = vmax.f32 %v1289, 0.0
      %v1306 = vmax.f32 %v1290, 0.0
      %v1307 = vmax.f32 %v1291, 0.0
      %v1308 = vld [vmem:[%s6] sm:$0x1]
      %v1310 = vperm.slane %v1308, 0
      %v1312 = vmul.f32 %v1292, %v1310
      %v1313 = vmul.f32 %v1293, %v1310
      %v1314 = vmul.f32 %v1294, %v1310
      %v1315 = vmul.f32 %v1295, %v1310
      %v1316 = vmul.f32 %v1296, %v1310
      %v1317 = vmul.f32 %v1297, %v1310
      %v1318 = vmul.f32 %v1298, %v1310
      %v1319 = vmul.f32 %v1299, %v1310
      %v1320 = vmul.f32 %v1300, %v1310
      %v1321 = vmul.f32 %v1301, %v1310
      %v1322 = vmul.f32 %v1302, %v1310
      %v1323 = vmul.f32 %v1303, %v1310
      %v1324 = vmul.f32 %v1304, %v1310
      %v1325 = vmul.f32 %v1305, %v1310
      %v1326 = vmul.f32 %v1306, %v1310
      %v1327 = vmul.f32 %v1307, %v1310
      %v1328 = vld [vmem:[%s7] sm:$0x1]
      %v1330 = vperm.slane %v1328, 0
      %v1332 = vadd.f32 %v1312, %v1330
      %v1333 = vadd.f32 %v1313, %v1330
      %v1334 = vadd.f32 %v1314, %v1330
      %v1335 = vadd.f32 %v1315, %v1330
      %v1336 = vadd.f32 %v1316, %v1330
      %v1337 = vadd.f32 %v1317, %v1330
      %v1338 = vadd.f32 %v1318, %v1330
      %v1339 = vadd.f32 %v1319, %v1330
      %v1340 = vadd.f32 %v1320, %v1330
      %v1341 = vadd.f32 %v1321, %v1330
      %v1342 = vadd.f32 %v1322, %v1330
      %v1343 = vadd.f32 %v1323, %v1330
      %v1344 = vadd.f32 %v1324, %v1330
      %v1345 = vadd.f32 %v1325, %v1330
      %v1346 = vadd.f32 %v1326, %v1330
      %v1347 = vadd.f32 %v1327, %v1330
      %v1348 = vld [vmem:[%s8] sm:$0xff]
      %v1349 = vld [vmem:[%s8 + $0x8] sm:$0xff]
      %v1350 = vld [vmem:[%s8 + $0x10] sm:$0xff]
      %v1351 = vld [vmem:[%s8 + $0x18] sm:$0xff]
      %v1352 = vld [vmem:[%s9] sm:$0x1]
      %v1354 = vperm.slane %v1352, 0
      %vm1356 = vcmask 261120
      %v1358 = vsel %vm1356, %v1332, 0
      %v1361 = vsel %vm1356, %v1333, 0
      %v1364 = vsel %vm1356, %v1334, 0
      %v1367 = vsel %vm1356, %v1335, 0
      %v1370 = vsel %vm1356, %v1336, 0
      %v1373 = vsel %vm1356, %v1337, 0
      %v1376 = vsel %vm1356, %v1338, 0
      %v1379 = vsel %vm1356, %v1339, 0
      %v1382 = vsel %vm1356, %v1340, 0
      %v1385 = vsel %vm1356, %v1341, 0
      %v1388 = vsel %vm1356, %v1342, 0
      %v1391 = vsel %vm1356, %v1343, 0
      %v1394 = vsel %vm1356, %v1344, 0
      %v1397 = vsel %vm1356, %v1345, 0
      %v1400 = vsel %vm1356, %v1346, 0
      %v1403 = vsel %vm1356, %v1347, 0
      %1405 = vmatpush.msra.mxu0 0.0
      %1406 = vmatpush.msra.mxu0 0.0
      %1407 = vmatpush.msra.mxu0 0.0
      %1408 = vmatpush.msra.mxu0 0.0
      %1409 = vmatpush.msra.mxu0 0.0
      %1410 = vmatpush.msra.mxu0 0.0
      %1411 = vmatpush.msra.mxu0 0.0
      %1412 = vmatpush.msra.mxu0 0.0
      %1413 = vmatpush.msra.mxu0 0.0
      %1414 = vmatpush.msra.mxu0 0.0
      %1415 = vmatpush.msra.mxu0 0.0
      %1416 = vmatpush.msra.mxu0 0.0
      %1417 = vmatpush.msra.mxu0 %v1351
      %1418 = vmatpush.msra.mxu0 %v1350
      %1419 = vmatpush.msra.mxu0 %v1349
      %1420 = vmatpush.msra.mxu0 %v1348
      %1421 = vmatmul.f32.gmra.mxu0 %v1358
      %v1422 = vpop.f32.mrf.mxu0
      %v1423 = vadd.f32 %v1354, %v1422
      %1424 = vmatmul.f32.gmra.mxu0 %v1361
      %v1425 = vpop.f32.mrf.mxu0
      %v1426 = vadd.f32 %v1354, %v1425
      %1427 = vmatmul.f32.gmra.mxu0 %v1364
      %v1428 = vpop.f32.mrf.mxu0
      %v1429 = vadd.f32 %v1354, %v1428
      %1430 = vmatmul.f32.gmra.mxu0 %v1367
      %v1431 = vpop.f32.mrf.mxu0
      %v1432 = vadd.f32 %v1354, %v1431
      %1433 = vmatmul.f32.gmra.mxu0 %v1370
      %v1434 = vpop.f32.mrf.mxu0
      %v1435 = vadd.f32 %v1354, %v1434
      %1436 = vmatmul.f32.gmra.mxu0 %v1373
      %v1437 = vpop.f32.mrf.mxu0
      %v1438 = vadd.f32 %v1354, %v1437
      %1439 = vmatmul.f32.gmra.mxu0 %v1376
      %v1440 = vpop.f32.mrf.mxu0
      %v1441 = vadd.f32 %v1354, %v1440
      %1442 = vmatmul.f32.gmra.mxu0 %v1379
      %v1443 = vpop.f32.mrf.mxu0
      %v1444 = vadd.f32 %v1354, %v1443
      %1445 = vmatmul.f32.gmra.mxu0 %v1382
      %v1446 = vpop.f32.mrf.mxu0
      %v1447 = vadd.f32 %v1354, %v1446
      %1448 = vmatmul.f32.gmra.mxu0 %v1385
      %v1449 = vpop.f32.mrf.mxu0
      %v1450 = vadd.f32 %v1354, %v1449
      %1451 = vmatmul.f32.gmra.mxu0 %v1388
      %v1452 = vpop.f32.mrf.mxu0
      %v1453 = vadd.f32 %v1354, %v1452
      %1454 = vmatmul.f32.gmra.mxu0 %v1391
      %v1455 = vpop.f32.mrf.mxu0
      %v1456 = vadd.f32 %v1354, %v1455
      %1457 = vmatmul.f32.gmra.mxu0 %v1394
      %v1458 = vpop.f32.mrf.mxu0
      %v1459 = vadd.f32 %v1354, %v1458
      %1460 = vmatmul.f32.gmra.mxu0 %v1397
      %v1461 = vpop.f32.mrf.mxu0
      %v1462 = vadd.f32 %v1354, %v1461
      %1463 = vmatmul.f32.gmra.mxu0 %v1400
      %v1464 = vpop.f32.mrf.mxu0
      %v1465 = vadd.f32 %v1354, %v1464
      %1466 = vmatmul.f32.gmra.mxu0 %v1403
      %v1467 = vpop.f32.mrf.mxu0
      %v1468 = vadd.f32 %v1354, %v1467
      %1469 = vdwg.mxu0
      %v1470 = vmax.f32 %v1423, 0.0
      %v1471 = vmax.f32 %v1426, 0.0
      %v1472 = vmax.f32 %v1429, 0.0
      %v1473 = vmax.f32 %v1432, 0.0
      %v1474 = vmax.f32 %v1435, 0.0
      %v1475 = vmax.f32 %v1438, 0.0
      %v1476 = vmax.f32 %v1441, 0.0
      %v1477 = vmax.f32 %v1444, 0.0
      %v1478 = vmax.f32 %v1447, 0.0
      %v1479 = vmax.f32 %v1450, 0.0
      %v1480 = vmax.f32 %v1453, 0.0
      %v1481 = vmax.f32 %v1456, 0.0
      %v1482 = vmax.f32 %v1459, 0.0
      %v1483 = vmax.f32 %v1462, 0.0
      %v1484 = vmax.f32 %v1465, 0.0
      %v1485 = vmax.f32 %v1468, 0.0
      %v1486 = vld [vmem:[%s10] sm:$0x1]
      %v1488 = vperm.slane %v1486, 0
      %v1490 = vmul.f32 %v1470, %v1488
      %v1491 = vmul.f32 %v1471, %v1488
      %v1492 = vmul.f32 %v1472, %v1488
      %v1493 = vmul.f32 %v1473, %v1488
      %v1494 = vmul.f32 %v1474, %v1488
      %v1495 = vmul.f32 %v1475, %v1488
      %v1496 = vmul.f32 %v1476, %v1488
      %v1497 = vmul.f32 %v1477, %v1488
      %v1498 = vmul.f32 %v1478, %v1488
      %v1499 = vmul.f32 %v1479, %v1488
      %v1500 = vmul.f32 %v1480, %v1488
      %v1501 = vmul.f32 %v1481, %v1488
      %v1502 = vmul.f32 %v1482, %v1488
      %v1503 = vmul.f32 %v1483, %v1488
      %v1504 = vmul.f32 %v1484, %v1488
      %v1505 = vmul.f32 %v1485, %v1488
      %v1506 = vld [vmem:[%s11] sm:$0x1]
      %v1508 = vperm.slane %v1506, 0
      %v1510 = vadd.f32 %v1490, %v1508
      %v1511 = vadd.f32 %v1491, %v1508
      %v1512 = vadd.f32 %v1492, %v1508
      %v1513 = vadd.f32 %v1493, %v1508
      %v1514 = vadd.f32 %v1494, %v1508
      %v1515 = vadd.f32 %v1495, %v1508
      %v1516 = vadd.f32 %v1496, %v1508
      %v1517 = vadd.f32 %v1497, %v1508
      %v1518 = vadd.f32 %v1498, %v1508
      %v1519 = vadd.f32 %v1499, %v1508
      %v1520 = vadd.f32 %v1500, %v1508
      %v1521 = vadd.f32 %v1501, %v1508
      %v1522 = vadd.f32 %v1502, %v1508
      %v1523 = vadd.f32 %v1503, %v1508
      %v1524 = vadd.f32 %v1504, %v1508
      %v1525 = vadd.f32 %v1505, %v1508
      %v1526 = vld [vmem:[%s12] sm:$0xff]
      %v1527 = vld [vmem:[%s12 + $0x8] sm:$0xff]
      %v1528 = vld [vmem:[%s13] sm:$0x1]
      %v1530 = vperm.slane %v1528, 0
      %v1533 = vsel %vm903, %v1510, 0
      %v1536 = vsel %vm903, %v1511, 0
      %v1539 = vsel %vm903, %v1512, 0
      %v1542 = vsel %vm903, %v1513, 0
      %v1545 = vsel %vm903, %v1514, 0
      %v1548 = vsel %vm903, %v1515, 0
      %v1551 = vsel %vm903, %v1516, 0
      %v1554 = vsel %vm903, %v1517, 0
      %v1557 = vsel %vm903, %v1518, 0
      %v1560 = vsel %vm903, %v1519, 0
      %v1563 = vsel %vm903, %v1520, 0
      %v1566 = vsel %vm903, %v1521, 0
      %v1569 = vsel %vm903, %v1522, 0
      %v1572 = vsel %vm903, %v1523, 0
      %v1575 = vsel %vm903, %v1524, 0
      %v1578 = vsel %vm903, %v1525, 0
      %1580 = vmatpush.msra.mxu0 0.0
      %1581 = vmatpush.msra.mxu0 0.0
      %1582 = vmatpush.msra.mxu0 0.0
      %1583 = vmatpush.msra.mxu0 0.0
      %1584 = vmatpush.msra.mxu0 0.0
      %1585 = vmatpush.msra.mxu0 0.0
      %1586 = vmatpush.msra.mxu0 0.0
      %1587 = vmatpush.msra.mxu0 0.0
      %1588 = vmatpush.msra.mxu0 0.0
      %1589 = vmatpush.msra.mxu0 0.0
      %1590 = vmatpush.msra.mxu0 0.0
      %1591 = vmatpush.msra.mxu0 0.0
      %1592 = vmatpush.msra.mxu0 0.0
      %1593 = vmatpush.msra.mxu0 0.0
      %1594 = vmatpush.msra.mxu0 %v1527
      %1595 = vmatpush.msra.mxu0 %v1526
      %1596 = vmatmul.f32.gmra.mxu0 %v1533
      %v1597 = vpop.f32.mrf.mxu0
      %v1598 = vadd.f32 %v1530, %v1597
      %1599 = vmatmul.f32.gmra.mxu0 %v1536
      %v1600 = vpop.f32.mrf.mxu0
      %v1601 = vadd.f32 %v1530, %v1600
      %1602 = vmatmul.f32.gmra.mxu0 %v1539
      %v1603 = vpop.f32.mrf.mxu0
      %v1604 = vadd.f32 %v1530, %v1603
      %1605 = vmatmul.f32.gmra.mxu0 %v1542
      %v1606 = vpop.f32.mrf.mxu0
      %v1607 = vadd.f32 %v1530, %v1606
      %1608 = vmatmul.f32.gmra.mxu0 %v1545
      %v1609 = vpop.f32.mrf.mxu0
      %v1610 = vadd.f32 %v1530, %v1609
      %1611 = vmatmul.f32.gmra.mxu0 %v1548
      %v1612 = vpop.f32.mrf.mxu0
      %v1613 = vadd.f32 %v1530, %v1612
      %1614 = vmatmul.f32.gmra.mxu0 %v1551
      %v1615 = vpop.f32.mrf.mxu0
      %v1616 = vadd.f32 %v1530, %v1615
      %1617 = vmatmul.f32.gmra.mxu0 %v1554
      %v1618 = vpop.f32.mrf.mxu0
      %v1619 = vadd.f32 %v1530, %v1618
      %1620 = vmatmul.f32.gmra.mxu0 %v1557
      %v1621 = vpop.f32.mrf.mxu0
      %v1622 = vadd.f32 %v1530, %v1621
      %1623 = vmatmul.f32.gmra.mxu0 %v1560
      %v1624 = vpop.f32.mrf.mxu0
      %v1625 = vadd.f32 %v1530, %v1624
      %1626 = vmatmul.f32.gmra.mxu0 %v1563
      %v1627 = vpop.f32.mrf.mxu0
      %v1628 = vadd.f32 %v1530, %v1627
      %1629 = vmatmul.f32.gmra.mxu0 %v1566
      %v1630 = vpop.f32.mrf.mxu0
      %v1631 = vadd.f32 %v1530, %v1630
      %1632 = vmatmul.f32.gmra.mxu0 %v1569
      %v1633 = vpop.f32.mrf.mxu0
      %v1634 = vadd.f32 %v1530, %v1633
      %1635 = vmatmul.f32.gmra.mxu0 %v1572
      %v1636 = vpop.f32.mrf.mxu0
      %v1637 = vadd.f32 %v1530, %v1636
      %1638 = vmatmul.f32.gmra.mxu0 %v1575
      %v1639 = vpop.f32.mrf.mxu0
      %v1640 = vadd.f32 %v1530, %v1639
      %1641 = vmatmul.f32.gmra.mxu0 %v1578
      %v1642 = vpop.f32.mrf.mxu0
      %v1643 = vadd.f32 %v1530, %v1642
      %1644 = vdwg.mxu0
      %v1645 = vmax.f32 %v1598, 0.0
      %v1646 = vmax.f32 %v1601, 0.0
      %v1647 = vmax.f32 %v1604, 0.0
      %v1648 = vmax.f32 %v1607, 0.0
      %v1649 = vmax.f32 %v1610, 0.0
      %v1650 = vmax.f32 %v1613, 0.0
      %v1651 = vmax.f32 %v1616, 0.0
      %v1652 = vmax.f32 %v1619, 0.0
      %v1653 = vmax.f32 %v1622, 0.0
      %v1654 = vmax.f32 %v1625, 0.0
      %v1655 = vmax.f32 %v1628, 0.0
      %v1656 = vmax.f32 %v1631, 0.0
      %v1657 = vmax.f32 %v1634, 0.0
      %v1658 = vmax.f32 %v1637, 0.0
      %v1659 = vmax.f32 %v1640, 0.0
      %v1660 = vmax.f32 %v1643, 0.0
      %v1661 = vld [vmem:[%s14] sm:$0x1]
      %v1663 = vperm.slane %v1661, 0
      %v1665 = vmul.f32 %v1645, %v1663
      %v1666 = vmul.f32 %v1646, %v1663
      %v1667 = vmul.f32 %v1647, %v1663
      %v1668 = vmul.f32 %v1648, %v1663
      %v1669 = vmul.f32 %v1649, %v1663
      %v1670 = vmul.f32 %v1650, %v1663
      %v1671 = vmul.f32 %v1651, %v1663
      %v1672 = vmul.f32 %v1652, %v1663
      %v1673 = vmul.f32 %v1653, %v1663
      %v1674 = vmul.f32 %v1654, %v1663
      %v1675 = vmul.f32 %v1655, %v1663
      %v1676 = vmul.f32 %v1656, %v1663
      %v1677 = vmul.f32 %v1657, %v1663
      %v1678 = vmul.f32 %v1658, %v1663
      %v1679 = vmul.f32 %v1659, %v1663
      %v1680 = vmul.f32 %v1660, %v1663
      %v1681 = vld [vmem:[%s15] sm:$0x1]
      %v1683 = vperm.slane %v1681, 0
      %v1685 = vadd.f32 %v1665, %v1683
      %v1686 = vadd.f32 %v1666, %v1683
      %v1687 = vadd.f32 %v1667, %v1683
      %v1688 = vadd.f32 %v1668, %v1683
      %v1689 = vadd.f32 %v1669, %v1683
      %v1690 = vadd.f32 %v1670, %v1683
      %v1691 = vadd.f32 %v1671, %v1683
      %v1692 = vadd.f32 %v1672, %v1683
      %v1693 = vadd.f32 %v1673, %v1683
      %v1694 = vadd.f32 %v1674, %v1683
      %v1695 = vadd.f32 %v1675, %v1683
      %v1696 = vadd.f32 %v1676, %v1683
      %v1697 = vadd.f32 %v1677, %v1683
      %v1698 = vadd.f32 %v1678, %v1683
      %v1699 = vadd.f32 %v1679, %v1683
      %v1700 = vadd.f32 %v1680, %v1683
      %vm1701 = vcmask 31744
      %1702 = vst.msk [vmem:[%s545] sm:$0xff] %vm1701, %v1685
      %1703 = vst.msk [vmem:[%s545 + $0x8] sm:$0xff] %vm1701, %v1686
      %1704 = vst.msk [vmem:[%s545 + $0x10] sm:$0xff] %vm1701, %v1687
      %1705 = vst.msk [vmem:[%s545 + $0x18] sm:$0xff] %vm1701, %v1688
      %1706 = vst.msk [vmem:[%s545 + $0x20] sm:$0xff] %vm1701, %v1689
      %1707 = vst.msk [vmem:[%s545 + $0x28] sm:$0xff] %vm1701, %v1690
      %1708 = vst.msk [vmem:[%s545 + $0x30] sm:$0xff] %vm1701, %v1691
      %1709 = vst.msk [vmem:[%s545 + $0x38] sm:$0xff] %vm1701, %v1692
      %1710 = vst.msk [vmem:[%s545 + $0x40] sm:$0xff] %vm1701, %v1693
      %1711 = vst.msk [vmem:[%s545 + $0x48] sm:$0xff] %vm1701, %v1694
      %1712 = vst.msk [vmem:[%s545 + $0x50] sm:$0xff] %vm1701, %v1695
      %1713 = vst.msk [vmem:[%s545 + $0x58] sm:$0xff] %vm1701, %v1696
      %1714 = vst.msk [vmem:[%s545 + $0x60] sm:$0xff] %vm1701, %v1697
      %1715 = vst.msk [vmem:[%s545 + $0x68] sm:$0xff] %vm1701, %v1698
      %1716 = vst.msk [vmem:[%s545 + $0x70] sm:$0xff] %vm1701, %v1699
      %1717 = vst.msk [vmem:[%s545 + $0x78] sm:$0xff] %vm1701, %v1700
      %s1718 = smul.u32 16, %s27
      %p1719 = scmp.lt.s32.totalorder %s1718, 31
      %s1720 = scalar_select %p1719, %s1718, 31
      %s1721 = smul.addr %s1720, 8
      %s1722 = scalar_lea.vmem %s16, %s1721
      // Predicated region
      $region85: #{gene_forward.1} parent=83 // pred_check
        %p1723 = pneg %p391
      $region86: #{gene_forward.1} parent=83 // pred_check_branch
        %1725 = sbr.rel (%p1723) target = $region88
      $region87: #{gene_forward.1} parent=83 // pred_region
        %s1726 = smul.u32 16, %s27
      $region88: #{gene_forward.1} parent=83 // pred_fallthru
        _
    $region84: #{gene_forward.1} parent=5 // pred_fallthru
      _
    %p1727 = scmp.le.s32.totalorder 2, %s22
    // Predicated region
    $region89: #{gene_forward.1} parent=5 // pred_check
      %p1728 = pneg %p1727
    $region90: #{gene_forward.1} parent=5 // pred_check_branch
      %1730 = sbr.rel (%p1728) target = $region92
    $region91: #{gene_forward.1} parent=5 // pred_region
      %s1731 = ssub.s32 %s22, 2
      // Predicated region
      $region93: #{gene_forward.1} parent=91 // pred_check
        %p1732 = pneg %p397
      $region94: #{gene_forward.1} parent=91 // pred_check_branch
        %1734 = sbr.rel (%p1732) target = $region96
      $region95: #{gene_forward.1} parent=91 // pred_region
        %s1735 = smul.u32 16, %s28
        %p1736 = scmp.lt.s32.totalorder %s1735, 31
        %s1737 = scalar_select %p1736, %s1735, 31
        %s1738 = smul.addr %s1737, 8
        %s1739 = scalar_lea.vmem %s16, %s1738
      $region96: #{gene_forward.1} parent=91 // pred_fallthru
        _
    $region92: #{gene_forward.1} parent=5 // pred_fallthru
      _
  $region6: #{gene_forward.1} parent=0 // loop_footer
    %s26 = sadd.s32 1, %s22
  $region7: #{gene_forward.1} parent=0 // loop_footer_branch
    %21 = sbr.rel target = $region3
  $region8: #{gene_forward.1} parent=0 // loop_exit
    _

</llo_original>
